<compile_context>
chip_gen: v6e
topology: v6e:2x2x1
jax: 0.10.0
libtpu: 0.0.40
codegen_flags: <defaults>
</compile_context>

<pallas_src>
import functools

import jax
import jax.numpy as jnp
from jax import lax
from jax.experimental import pallas as pl
from jax.experimental.pallas import tpu as pltpu


# ----------------------------------------------------------------------------- kernel

def bottleneck3d_kernel(H, R, LP,
                        x_ref,
                        m1_ref, b1_ref,
                        m2_ref, b2_ref,
                        m3_ref, b3_ref,
                        m4_ref, b4_ref,
                        m5_ref, b5_ref,
                        mask_ref,
                        o_ref):
    """Fused Bottleneck3D forward for one tile of whole batch elements.

    x_ref   : (R, W*Cin)     channels-last activations (R = TILE_B * D * H rows)
    m1_ref  : (W*Cin, LP)    conv1 (1x1x1) block-diag over W, BN1 folded, zero-padded to LP
    m2_ref  : (LP, LP)       conv2 (1,1,3) banded block matrix (taps + zero pad), BN2 folded
    m3_ref  : (LP, 3*LP)     conv3 (1,3,1): three block-diag tap matrices, each LP lanes wide
    m4_ref  : (LP, 3*LP)     conv4 (3,1,1): likewise
    m5_ref  : (LP, W*Cexp)   conv5 (1x1x1) expansion, BN5 folded
    b*_ref  : (1, LP|W*Cexp) folded BN biases (f32, zero in padding lanes)
    mask_ref: (R, 4*LP) f32  lane-broadcast boundary masks [h!=0 | h!=H-1 | d!=0 | d!=D-1]
    o_ref   : (R, W*Cexp)
    """
    def mm(a, w_ref):
        w = w_ref[...]
        # matmul operands in the weight dtype (bf16 on v6e/v7x), f32 accumulation
        return jnp.dot(a.astype(w.dtype), w, preferred_element_type=jnp.float32)

    relu = lambda a: jnp.maximum(a, 0.0)

    # conv1 (1x1x1) + bn1 + relu
    out1 = relu(mm(x_ref[...], m1_ref) + b1_ref[...])

    # conv2 (1,1,3) along W + bn2: the banded matrix already holds the three taps, the
    # channel mixing and the zero padding -> single matmul, no rolls/masks.
    out2 = mm(out1, m2_ref) + b2_ref[...]

    # conv3 (1,3,1) along H + bn3 ; residual add of out2.  One fused 3-tap matmul, then
    # XLU rolls; all slices below are 128-lane-tile aligned (LP is a multiple of 128).
    z = mm(relu(out2), m3_ref)                                    # (R, 3*LP): taps [h-1, h, h+1]
    c_prev = pltpu.roll(z[:, 0:LP], shift=1, axis=0) * mask_ref[:, 0:LP]
    c_next = pltpu.roll(z[:, 2 * LP:3 * LP], shift=R - 1, axis=0) * mask_ref[:, LP:2 * LP]
    out3 = c_prev + z[:, LP:2 * LP] + c_next + b3_ref[...] + out2

    # conv4 (3,1,1) along D + bn4 ; residual adds of out2 and out3.
    skip23 = out2 + out3                                          # out2 dead after this
    z = mm(relu(out3), m4_ref)                                    # (R, 3*LP): taps [d-1, d, d+1]
    c_prev = pltpu.roll(z[:, 0:LP], shift=H, axis=0) * mask_ref[:, 2 * LP:3 * LP]
    c_next = pltpu.roll(z[:, 2 * LP:3 * LP], shift=R - H, axis=0) * mask_ref[:, 3 * LP:4 * LP]
    out4 = c_prev + z[:, LP:2 * LP] + c_next + b4_ref[...] + skip23

    # conv5 (1x1x1 expansion) + bn5 ; skip connection (x re-read here to shorten its live
    # range) ; final relu.  Output last dim is a multiple of 128 -> unmasked lane-dense stores.
    out5 = mm(relu(out4), m5_ref) + b5_ref[...] + x_ref[...].astype(jnp.float32)
    o_ref[...] = relu(out5).astype(o_ref.dtype)


# ----------------------------------------------------------------------------- wrapper

def bottleneck3d_pallas(x_cl, params, D, H, W, *, rows_per_tile_target=512):
    """x_cl: (N, D, H, W, Cin) channels-last. Returns (N, D, H, W, Cexp) in x_cl.dtype."""
    N, Dx, Hx, Wx, Cin = x_cl.shape
    assert (Dx, Hx, Wx) == (D, H, W)
    DH = D * H
    WCin = W * Cin
    LP = params["m1"].shape[1]
    WCexp = params["m5"].shape[1]
    Cexp = WCexp // W

    # layout contract: lane-dense input/output slabs and a valid residual add
    assert params["m1"].shape[0] == WCin, "packed conv1 rows must match W*Cin"
    assert WCin % 128 == 0 and WCexp % 128 == 0, \
        "W*Cin and W*Cexp must be multiples of 128 for lane-dense packed slabs"
    assert Cin == Cexp, "residual add requires inplanes == planes*expansion"

    # Tile whole batch elements per grid step: rolls + masks stay exact (no halos), and the
    # grid axis is parallel, so both v7x TensorCores are busy whenever it has >=2 steps.
    # TODO(synk): for N==1 volumes too large for VMEM, add a halo-recompute D-axis grid so
    # v7x's second TensorCore is filled; the masks must then become global-position aware.
    # TODO(synk): for production channel counts with C >= 128, drop the kron(I_W, .) W-in-lane
    # packing (W-fold weight inflation) and handle the W-axis conv with +/-1 rolls like conv3/4.
    tile_b = 1
    for t in range(N, 0, -1):
        if N % t == 0 and t * DH <= max(rows_per_tile_target, DH):
            tile_b = t
            break
    R = tile_b * DH
    n_tiles = N // tile_b

    # Free row-major view: (N, D, H, W, C) -> (N*D*H, W*C). No transposes anywhere.
    x_flat = x_cl.reshape(N * DH, WCin)
    out_dtype = x_cl.dtype

    # Lane-broadcast boundary masks (periodic per batch element, so one per-tile slab).
    r = jnp.arange(R)
    h_idx = r % H
    d_idx = (r // H) % D
    masks = jnp.stack([h_idx != 0, h_idx != H - 1, d_idx != 0, d_idx != D - 1],
                      axis=1).astype(jnp.float32)
    masks = jnp.repeat(masks, LP, axis=1)                         # (R, 4*LP), tile-aligned blocks

    kernel = functools.partial(bottleneck3d_kernel, H, R, LP)

    def rep(arr):
        return pl.BlockSpec(arr.shape, lambda i, nd=arr.ndim: (0,) * nd)

    # Advisory cost hint for XLA scheduling around the call.
    flops = 2 * N * DH * (WCin * LP + LP * LP + 2 * (LP * 3 * LP) + LP * WCexp)
    weight_bytes = sum(int(v.size) * v.dtype.itemsize for v in params.values()) \
        + int(masks.size) * 4
    bytes_accessed = (int(x_flat.size) * x_flat.dtype.itemsize
                      + N * DH * WCexp * jnp.dtype(out_dtype).itemsize
                      + weight_bytes)
    cost = pl.CostEstimate(flops=flops, transcendentals=0, bytes_accessed=bytes_accessed)

    # Explicit scoped-VMEM budget: double-buffered IO blocks + resident weights/masks + live
    # f32 intermediates, with headroom, clamped under v7x's 64 MiB physical VMEM (and above
    # v5e's 16 MiB default scoped limit so larger row tiles don't hit the default ceiling).
    io_bytes = 2 * R * (WCin * x_flat.dtype.itemsize + WCexp * jnp.dtype(out_dtype).itemsize)
    live_bytes = 4 * R * (WCin + WCexp + 6 * LP + 2 * 3 * LP)
    vmem_limit = int(1.5 * (2 * weight_bytes + io_bytes + live_bytes))
    vmem_limit = max(vmem_limit, 16 * 1024 * 1024)
    vmem_limit = min(vmem_limit, 48 * 1024 * 1024)

    out_flat = pl.pallas_call(
        kernel,
        out_shape=jax.ShapeDtypeStruct((N * DH, WCexp), out_dtype),
        grid=(n_tiles,),
        in_specs=[
            pl.BlockSpec((R, WCin), lambda i: (i, 0)),            # x (per batch-element tile)
            rep(params["m1"]), rep(params["b1"]),
            rep(params["m2"]), rep(params["b2"]),
            rep(params["m3"]), rep(params["b3"]),
            rep(params["m4"]), rep(params["b4"]),
            rep(params["m5"]), rep(params["b5"]),
            rep(masks),
        ],
        out_specs=pl.BlockSpec((R, WCexp), lambda i: (i, 0)),
        compiler_params=pltpu.CompilerParams(
            dimension_semantics=("parallel",),
            vmem_limit_bytes=vmem_limit),
        cost_estimate=cost,
    )(x_flat,
      params["m1"], params["b1"],
      params["m2"], params["b2"],
      params["m3"], params["b3"],
      params["m4"], params["b4"],
      params["m5"], params["b5"],
      masks)

    return out_flat.reshape(N, D, H, W, Cexp)


# ----------------------------------------------------------------------------- reference (pure JAX)

def bottleneck3d_ref(x, tw):
    """Reference forward in PyTorch NCDHW layout using lax.conv (for verification)."""
    dn = ("NCDHW", "OIDHW", "NCDHW")

    def conv(a, w, pad):
        return lax.conv_general_dilated(a, w, (1, 1, 1), pad, dimension_numbers=dn,
                                        precision=lax.Precision.HIGHEST)

    def bn(a, sb):
        s, b = sb
        return a * s[None, :, None, None, None] + b[None, :, None, None, None]

    relu = lambda a: jnp.maximum(a, 0.0)

    out1 = relu(bn(conv(x, tw["w1"], [(0, 0)] * 3), tw["bn1"]))
    out2 = bn(conv(out1, tw["w2"], [(0, 0), (0, 0), (1, 1)]), tw["bn2"])
    out2_relu = relu(out2)
    out3 = bn(conv(out2_relu, tw["w3"], [(0, 0), (1, 1), (0, 0)]), tw["bn3"])
    out3 = out3 + out2
    out3_relu = relu(out3)
    out4 = bn(conv(out3_relu, tw["w4"], [(1, 1), (0, 0), (0, 0)]), tw["bn4"])
    out4 = out4 + out2 + out3
    out4_relu = relu(out4)
    out5 = bn(conv(out4_relu, tw["w5"], [(0, 0)] * 3), tw["bn5"])
    return relu(out5 + x)


# ----------------------------------------------------------------------------- params

def make_torch_weights(key, inplanes, planes, expansion):
    keys = jax.random.split(key, 10)

    def conv_w(k, co, ci, kd, kh, kw):
        # PyTorch layout (out_ch, in_ch, kD, kH, kW)
        return jax.random.normal(k, (co, ci, kd, kh, kw), jnp.float32) * 0.1

    def bn_fold(k, c):
        k1, k2, k3, k4 = jax.random.split(k, 4)
        gamma = 1.0 + 0.1 * jax.random.normal(k1, (c,), jnp.float32)
        beta = 0.1 * jax.random.normal(k2, (c,), jnp.float32)
        mean = 0.1 * jax.random.normal(k3, (c,), jnp.float32)
        var = 1.0 + 0.1 * jax.random.uniform(k4, (c,), jnp.float32)
        eps = 1e-5
        scale = gamma / jnp.sqrt(var + eps)
        bias = beta - mean * scale
        return scale, bias

    cexp = planes * expansion
    return {
        "w1": conv_w(keys[0], planes, inplanes, 1, 1, 1),
        "w2": conv_w(keys[1], planes, planes, 1, 1, 3),
        "w3": conv_w(keys[2], planes, planes, 1, 3, 1),
        "w4": conv_w(keys[3], planes, planes, 3, 1, 1),
        "w5": conv_w(keys[4], cexp, planes, 1, 1, 1),
        "bn1": bn_fold(keys[5], planes),
        "bn2": bn_fold(keys[6], planes),
        "bn3": bn_fold(keys[7], planes),
        "bn4": bn_fold(keys[8], planes),
        "bn5": bn_fold(keys[9], cexp),
    }


def pack_params(tw, W, weight_dtype=jnp.float32):
    """Fold eval-mode BN into the conv weights and pack them as lane-aligned matrices."""
    planes = tw["w1"].shape[0]
    inplanes = tw["w1"].shape[1]
    cexp = tw["w5"].shape[0]
    WP = W * planes
    LP = -(-WP // 128) * 128                                      # round_up(W*planes, 128)
    eye_w = jnp.eye(W, dtype=jnp.float32)

    def pad_to(m, rows, cols):
        return jnp.pad(m, ((0, rows - m.shape[0]), (0, cols - m.shape[1])))

    def block_diag(a):                                            # kron(I_W, A): (W*ci, W*co)
        return jnp.kron(eye_w, a)

    s1, b1 = tw["bn1"]; s2, b2 = tw["bn2"]; s3, b3 = tw["bn3"]
    s4, b4 = tw["bn4"]; s5, b5 = tw["bn5"]

    # conv1 / conv5 (1x1x1): BN scale folded into output channels, block-diag over W,
    # zero-padded to the LP lane width (padding lanes stay zero through the whole kernel).
    m1 = pad_to(block_diag(tw["w1"][:, :, 0, 0, 0].T * s1[None, :]), W * inplanes, LP)
    m5 = pad_to(block_diag(tw["w5"][:, :, 0, 0, 0].T * s5[None, :]), LP, W * cexp)

    # conv2 (1,1,3): taps + zero padding + channel mixing as one banded block matrix.
    m2 = jnp.zeros((WP, WP), jnp.float32)
    for t in range(3):
        tap = tw["w2"][:, :, 0, 0, t].T * s2[None, :]             # (P_in, P_out)
        m2 = m2 + jnp.kron(jnp.eye(W, k=1 - t, dtype=jnp.float32), tap)
    m2 = pad_to(m2, LP, LP)

    # conv3 (1,3,1) / conv4 (3,1,1): three block-diag tap matrices, each padded to a full
    # 128-lane multiple BEFORE concatenation so the kernel's output slices are tile-aligned.
    m3 = jnp.concatenate(
        [pad_to(block_diag(tw["w3"][:, :, 0, t, 0].T * s3[None, :]), LP, LP) for t in range(3)],
        axis=1)
    m4 = jnp.concatenate(
        [pad_to(block_diag(tw["w4"][:, :, t, 0, 0].T * s4[None, :]), LP, LP) for t in range(3)],
        axis=1)

    def tile_bias(b, width):                                      # (C,) -> (1, width) f32
        tb = jnp.tile(b, W)[None, :]
        return jnp.pad(tb, ((0, 0), (0, width - tb.shape[1])))

    # biases stay f32 (all elementwise math is f32); only the matmul weights take weight_dtype
    return {
        "m1": m1.astype(weight_dtype), "b1": tile_bias(b1, LP),
        "m2": m2.astype(weight_dtype), "b2": tile_bias(b2, LP),
        "m3": m3.astype(weight_dtype), "b3": tile_bias(b3, LP),
        "m4": m4.astype(weight_dtype), "b4": tile_bias(b4, LP),
        "m5": m5.astype(weight_dtype), "b5": tile_bias(b5, W * cexp),
    }


# ----------------------------------------------------------------------------- main

if __name__ == "__main__":
    # small shapes: batch=2, planes=4, expansion=4 -> inplanes=16, spatial D=H=W=8
    planes, expansion = 4, 4
    inplanes = planes * expansion      # residual add requires inplanes == planes*expansion
    N, D, H, W = 2, 8, 8, 8            # W*Cin = W*Cexp = 128 -> lane-dense packed layout

    key = jax.random.PRNGKey(0)
    kx, kp = jax.random.split(key)
    # canonical layout is channels-last end-to-end; NCDHW appears only in the reference check
    x_cl = jax.random.normal(kx, (N, D, H, W, inplanes), jnp.float32)

    torch_w = make_torch_weights(kp, inplanes, planes, expansion)

    # reference (f32 lax.conv, PyTorch NCDHW layout)
    x_ncdhw = jnp.transpose(x_cl, (0, 4, 1, 2, 3))
    ref_cl = jax.block_until_ready(
        jnp.transpose(bottleneck3d_ref(x_ncdhw, torch_w), (0, 2, 3, 4, 1)))

    # --- f32 path: exact parity with the reference --------------------------------------
    params_f32 = pack_params(torch_w, W, weight_dtype=jnp.float32)
    out_f32 = jax.block_until_ready(bottleneck3d_pallas(x_cl, params_f32, D, H, W))
    assert out_f32.shape == (N, D, H, W, planes * expansion)
    err = float(jnp.max(jnp.abs(out_f32 - ref_cl)))
    assert err < 5e-3, f"f32 max abs error too large: {err}"

    # --- bf16 path: bf16 weights/activations (v6e & v7x MXU), f32 accumulate/elementwise -
    params_bf16 = pack_params(torch_w, W, weight_dtype=jnp.bfloat16)
    out_bf16 = jax.block_until_ready(
        bottleneck3d_pallas(x_cl.astype(jnp.bfloat16), params_bf16, D, H, W))
    err_bf16 = float(jnp.max(jnp.abs(out_bf16.astype(jnp.float32) - ref_cl)))
    assert err_bf16 < 2e-1, f"bf16 max abs error too large: {err_bf16}"

    print("KERNEL_OK")
</pallas_src>

<mosaic_0001>
module attributes {stable_mosaic.version = 11 : i64} {
  func.func @bottleneck3d_kernel(%arg0: i32, %arg1: memref<128x128xf32, #tpu.memory_space<vmem>>, %arg2: memref<128x128xf32, #tpu.memory_space<vmem>>, %arg3: memref<1x128xf32, #tpu.memory_space<vmem>>, %arg4: memref<128x128xf32, #tpu.memory_space<vmem>>, %arg5: memref<1x128xf32, #tpu.memory_space<vmem>>, %arg6: memref<128x384xf32, #tpu.memory_space<vmem>>, %arg7: memref<1x128xf32, #tpu.memory_space<vmem>>, %arg8: memref<128x384xf32, #tpu.memory_space<vmem>>, %arg9: memref<1x128xf32, #tpu.memory_space<vmem>>, %arg10: memref<128x128xf32, #tpu.memory_space<vmem>>, %arg11: memref<1x128xf32, #tpu.memory_space<vmem>>, %arg12: memref<128x512xf32, #tpu.memory_space<vmem>>, %arg13: memref<128x128xf32, #tpu.memory_space<vmem>>) attributes {dimension_semantics = [#tpu.dimension_semantics<parallel>], iteration_bounds = array<i64: 1>, scalar_prefetch = 0 : i64, scratch_operands = 0 : i64, tpu.core_type = #tpu.core_type<tc>, window_params = [{transform_indices = @transform_0, window_bounds = array<i64: 128, 128>}, {pipeline_mode = #tpu.pipeline_mode<synchronous>, transform_indices = @transform_1, window_bounds = array<i64: 128, 128>}, {pipeline_mode = #tpu.pipeline_mode<synchronous>, transform_indices = @transform_2, window_bounds = array<i64: 1, 128>}, {pipeline_mode = #tpu.pipeline_mode<synchronous>, transform_indices = @transform_3, window_bounds = array<i64: 128, 128>}, {pipeline_mode = #tpu.pipeline_mode<synchronous>, transform_indices = @transform_4, window_bounds = array<i64: 1, 128>}, {pipeline_mode = #tpu.pipeline_mode<synchronous>, transform_indices = @transform_5, window_bounds = array<i64: 128, 384>}, {pipeline_mode = #tpu.pipeline_mode<synchronous>, transform_indices = @transform_6, window_bounds = array<i64: 1, 128>}, {pipeline_mode = #tpu.pipeline_mode<synchronous>, transform_indices = @transform_7, window_bounds = array<i64: 128, 384>}, {pipeline_mode = #tpu.pipeline_mode<synchronous>, transform_indices = @transform_8, window_bounds = array<i64: 1, 128>}, {pipeline_mode = #tpu.pipeline_mode<synchronous>, transform_indices = @transform_9, window_bounds = array<i64: 128, 128>}, {pipeline_mode = #tpu.pipeline_mode<synchronous>, transform_indices = @transform_10, window_bounds = array<i64: 1, 128>}, {pipeline_mode = #tpu.pipeline_mode<synchronous>, transform_indices = @transform_11, window_bounds = array<i64: 128, 512>}, {transform_indices = @transform_12, window_bounds = array<i64: 128, 128>}]} {
    %c0 = arith.constant 0 : index
    %c0_0 = arith.constant 0 : index
    %0 = vector.load %arg1[%c0, %c0_0] : memref<128x128xf32, #tpu.memory_space<vmem>>, vector<128x128xf32>
    %c0_1 = arith.constant 0 : index
    %c0_2 = arith.constant 0 : index
    %1 = vector.load %arg2[%c0_1, %c0_2] : memref<128x128xf32, #tpu.memory_space<vmem>>, vector<128x128xf32>
    %cst = arith.constant dense<0.000000e+00> : vector<128x128xf32>
    %2 = tpu.matmul %0, %1, %cst {dimension_numbers = #tpu.dot_dimension_numbers<[1], [0], [0], [1], [0, 0, 1, 1], [], []>} : vector<128x128xf32>, vector<128x128xf32>, vector<128x128xf32> -> vector<128x128xf32>
    %c0_3 = arith.constant 0 : index
    %c0_4 = arith.constant 0 : index
    %3 = vector.load %arg3[%c0_3, %c0_4] : memref<1x128xf32, #tpu.memory_space<vmem>>, vector<1x128xf32>
    %4 = vector.broadcast %3 : vector<1x128xf32> to vector<128x128xf32>
    %5 = arith.addf %2, %4 : vector<128x128xf32>
    %cst_5 = arith.constant 0.000000e+00 : f32
    %6 = vector.broadcast %cst_5 : f32 to vector<128x128xf32>
    %7 = arith.maximumf %5, %6 : vector<128x128xf32>
    %c0_6 = arith.constant 0 : index
    %c0_7 = arith.constant 0 : index
    %8 = vector.load %arg4[%c0_6, %c0_7] : memref<128x128xf32, #tpu.memory_space<vmem>>, vector<128x128xf32>
    %cst_8 = arith.constant dense<0.000000e+00> : vector<128x128xf32>
    %9 = tpu.matmul %7, %8, %cst_8 {dimension_numbers = #tpu.dot_dimension_numbers<[1], [0], [0], [1], [0, 0, 1, 1], [], []>} : vector<128x128xf32>, vector<128x128xf32>, vector<128x128xf32> -> vector<128x128xf32>
    %c0_9 = arith.constant 0 : index
    %c0_10 = arith.constant 0 : index
    %10 = vector.load %arg5[%c0_9, %c0_10] : memref<1x128xf32, #tpu.memory_space<vmem>>, vector<1x128xf32>
    %11 = vector.broadcast %10 : vector<1x128xf32> to vector<128x128xf32>
    %12 = arith.addf %9, %11 : vector<128x128xf32>
    %cst_11 = arith.constant 0.000000e+00 : f32
    %13 = vector.broadcast %cst_11 : f32 to vector<128x128xf32>
    %14 = arith.maximumf %12, %13 : vector<128x128xf32>
    %c0_12 = arith.constant 0 : index
    %c0_13 = arith.constant 0 : index
    %15 = vector.load %arg6[%c0_12, %c0_13] : memref<128x384xf32, #tpu.memory_space<vmem>>, vector<128x384xf32>
    %cst_14 = arith.constant dense<0.000000e+00> : vector<128x384xf32>
    %16 = tpu.matmul %14, %15, %cst_14 {dimension_numbers = #tpu.dot_dimension_numbers<[1], [0], [0], [1], [0, 0, 1, 1], [], []>} : vector<128x128xf32>, vector<128x384xf32>, vector<128x384xf32> -> vector<128x384xf32>
    %17 = vector.extract_strided_slice %16 {offsets = [0, 0], sizes = [128, 128], strides = [1, 1]} : vector<128x384xf32> to vector<128x128xf32>
    %c1_i32 = arith.constant 1 : i32
    %18 = tpu.dynamic_rotate %17 by %c1_i32 dim 0 : vector<128x128xf32>, i32 -> vector<128x128xf32>
    %c0_15 = arith.constant 0 : index
    %c0_16 = arith.constant 0 : index
    %19 = vector.load %arg12[%c0_15, %c0_16] : memref<128x512xf32, #tpu.memory_space<vmem>>, vector<128x128xf32>
    %20 = arith.mulf %18, %19 : vector<128x128xf32>
    %21 = vector.extract_strided_slice %16 {offsets = [0, 256], sizes = [128, 128], strides = [1, 1]} : vector<128x384xf32> to vector<128x128xf32>
    %c127_i32 = arith.constant 127 : i32
    %22 = tpu.dynamic_rotate %21 by %c127_i32 dim 0 : vector<128x128xf32>, i32 -> vector<128x128xf32>
    %c0_17 = arith.constant 0 : index
    %c128 = arith.constant 128 : index
    %23 = vector.load %arg12[%c0_17, %c128] : memref<128x512xf32, #tpu.memory_space<vmem>>, vector<128x128xf32>
    %24 = arith.mulf %22, %23 : vector<128x128xf32>
    %25 = vector.extract_strided_slice %16 {offsets = [0, 128], sizes = [128, 128], strides = [1, 1]} : vector<128x384xf32> to vector<128x128xf32>
    %26 = arith.addf %20, %25 : vector<128x128xf32>
    %27 = arith.addf %26, %24 : vector<128x128xf32>
    %c0_18 = arith.constant 0 : index
    %c0_19 = arith.constant 0 : index
    %28 = vector.load %arg7[%c0_18, %c0_19] : memref<1x128xf32, #tpu.memory_space<vmem>>, vector<1x128xf32>
    %29 = vector.broadcast %28 : vector<1x128xf32> to vector<128x128xf32>
    %30 = arith.addf %27, %29 : vector<128x128xf32>
    %31 = arith.addf %30, %12 : vector<128x128xf32>
    %32 = arith.addf %12, %31 : vector<128x128xf32>
    %cst_20 = arith.constant 0.000000e+00 : f32
    %33 = vector.broadcast %cst_20 : f32 to vector<128x128xf32>
    %34 = arith.maximumf %31, %33 : vector<128x128xf32>
    %c0_21 = arith.constant 0 : index
    %c0_22 = arith.constant 0 : index
    %35 = vector.load %arg8[%c0_21, %c0_22] : memref<128x384xf32, #tpu.memory_space<vmem>>, vector<128x384xf32>
    %cst_23 = arith.constant dense<0.000000e+00> : vector<128x384xf32>
    %36 = tpu.matmul %34, %35, %cst_23 {dimension_numbers = #tpu.dot_dimension_numbers<[1], [0], [0], [1], [0, 0, 1, 1], [], []>} : vector<128x128xf32>, vector<128x384xf32>, vector<128x384xf32> -> vector<128x384xf32>
    %37 = vector.extract_strided_slice %36 {offsets = [0, 0], sizes = [128, 128], strides = [1, 1]} : vector<128x384xf32> to vector<128x128xf32>
    %c8_i32 = arith.constant 8 : i32
    %38 = tpu.dynamic_rotate %37 by %c8_i32 dim 0 : vector<128x128xf32>, i32 -> vector<128x128xf32>
    %c0_24 = arith.constant 0 : index
    %c256 = arith.constant 256 : index
    %39 = vector.load %arg12[%c0_24, %c256] : memref<128x512xf32, #tpu.memory_space<vmem>>, vector<128x128xf32>
    %40 = arith.mulf %38, %39 : vector<128x128xf32>
    %41 = vector.extract_strided_slice %36 {offsets = [0, 256], sizes = [128, 128], strides = [1, 1]} : vector<128x384xf32> to vector<128x128xf32>
    %c120_i32 = arith.constant 120 : i32
    %42 = tpu.dynamic_rotate %41 by %c120_i32 dim 0 : vector<128x128xf32>, i32 -> vector<128x128xf32>
    %c0_25 = arith.constant 0 : index
    %c384 = arith.constant 384 : index
    %43 = vector.load %arg12[%c0_25, %c384] : memref<128x512xf32, #tpu.memory_space<vmem>>, vector<128x128xf32>
    %44 = arith.mulf %42, %43 : vector<128x128xf32>
    %45 = vector.extract_strided_slice %36 {offsets = [0, 128], sizes = [128, 128], strides = [1, 1]} : vector<128x384xf32> to vector<128x128xf32>
    %46 = arith.addf %40, %45 : vector<128x128xf32>
    %47 = arith.addf %46, %44 : vector<128x128xf32>
    %c0_26 = arith.constant 0 : index
    %c0_27 = arith.constant 0 : index
    %48 = vector.load %arg9[%c0_26, %c0_27] : memref<1x128xf32, #tpu.memory_space<vmem>>, vector<1x128xf32>
    %49 = vector.broadcast %48 : vector<1x128xf32> to vector<128x128xf32>
    %50 = arith.addf %47, %49 : vector<128x128xf32>
    %51 = arith.addf %50, %32 : vector<128x128xf32>
    %cst_28 = arith.constant 0.000000e+00 : f32
    %52 = vector.broadcast %cst_28 : f32 to vector<128x128xf32>
    %53 = arith.maximumf %51, %52 : vector<128x128xf32>
    %c0_29 = arith.constant 0 : index
    %c0_30 = arith.constant 0 : index
    %54 = vector.load %arg10[%c0_29, %c0_30] : memref<128x128xf32, #tpu.memory_space<vmem>>, vector<128x128xf32>
    %cst_31 = arith.constant dense<0.000000e+00> : vector<128x128xf32>
    %55 = tpu.matmul %53, %54, %cst_31 {dimension_numbers = #tpu.dot_dimension_numbers<[1], [0], [0], [1], [0, 0, 1, 1], [], []>} : vector<128x128xf32>, vector<128x128xf32>, vector<128x128xf32> -> vector<128x128xf32>
    %c0_32 = arith.constant 0 : index
    %c0_33 = arith.constant 0 : index
    %56 = vector.load %arg11[%c0_32, %c0_33] : memref<1x128xf32, #tpu.memory_space<vmem>>, vector<1x128xf32>
    %57 = vector.broadcast %56 : vector<1x128xf32> to vector<128x128xf32>
    %58 = arith.addf %55, %57 : vector<128x128xf32>
    %c0_34 = arith.constant 0 : index
    %c0_35 = arith.constant 0 : index
    %59 = vector.load %arg1[%c0_34, %c0_35] : memref<128x128xf32, #tpu.memory_space<vmem>>, vector<128x128xf32>
    %60 = arith.addf %58, %59 : vector<128x128xf32>
    %cst_36 = arith.constant 0.000000e+00 : f32
    %61 = vector.broadcast %cst_36 : f32 to vector<128x128xf32>
    %62 = arith.maximumf %60, %61 : vector<128x128xf32>
    %c0_37 = arith.constant 0 : index
    %c0_38 = arith.constant 0 : index
    %63 = vector.load %arg13[%c0_37, %c0_38] : memref<128x128xf32, #tpu.memory_space<vmem>>, vector<128x128xf32>
    tpu.vector_store %arg13[%c0_37, %c0_38], %62 {strides = array<i32>} : memref<128x128xf32, #tpu.memory_space<vmem>>, vector<128x128xf32>,
    return
  }
  func.func @transform_0(%arg0: i32) -> (i32, i32) {
    %c0_i32 = arith.constant 0 : i32
    %c0_i32_0 = arith.constant 0 : i32
    return %arg0, %c0_i32 : i32, i32
  }
  func.func @transform_1(%arg0: i32) -> (i32, i32) {
    %c0_i32 = arith.constant 0 : i32
    %c0_i32_0 = arith.constant 0 : i32
    %c0_i32_1 = arith.constant 0 : i32
    return %c0_i32, %c0_i32_0 : i32, i32
  }
  func.func @transform_2(%arg0: i32) -> (i32, i32) {
    %c0_i32 = arith.constant 0 : i32
    %c0_i32_0 = arith.constant 0 : i32
    %c0_i32_1 = arith.constant 0 : i32
    return %c0_i32, %c0_i32_0 : i32, i32
  }
  func.func @transform_3(%arg0: i32) -> (i32, i32) {
    %c0_i32 = arith.constant 0 : i32
    %c0_i32_0 = arith.constant 0 : i32
    %c0_i32_1 = arith.constant 0 : i32
    return %c0_i32, %c0_i32_0 : i32, i32
  }
  func.func @transform_4(%arg0: i32) -> (i32, i32) {
    %c0_i32 = arith.constant 0 : i32
    %c0_i32_0 = arith.constant 0 : i32
    %c0_i32_1 = arith.constant 0 : i32
    return %c0_i32, %c0_i32_0 : i32, i32
  }
  func.func @transform_5(%arg0: i32) -> (i32, i32) {
    %c0_i32 = arith.constant 0 : i32
    %c0_i32_0 = arith.constant 0 : i32
    %c0_i32_1 = arith.constant 0 : i32
    return %c0_i32, %c0_i32_0 : i32, i32
  }
  func.func @transform_6(%arg0: i32) -> (i32, i32) {
    %c0_i32 = arith.constant 0 : i32
    %c0_i32_0 = arith.constant 0 : i32
    %c0_i32_1 = arith.constant 0 : i32
    return %c0_i32, %c0_i32_0 : i32, i32
  }
  func.func @transform_7(%arg0: i32) -> (i32, i32) {
    %c0_i32 = arith.constant 0 : i32
    %c0_i32_0 = arith.constant 0 : i32
    %c0_i32_1 = arith.constant 0 : i32
    return %c0_i32, %c0_i32_0 : i32, i32
  }
  func.func @transform_8(%arg0: i32) -> (i32, i32) {
    %c0_i32 = arith.constant 0 : i32
    %c0_i32_0 = arith.constant 0 : i32
    %c0_i32_1 = arith.constant 0 : i32
    return %c0_i32, %c0_i32_0 : i32, i32
  }
  func.func @transform_9(%arg0: i32) -> (i32, i32) {
    %c0_i32 = arith.constant 0 : i32
    %c0_i32_0 = arith.constant 0 : i32
    %c0_i32_1 = arith.constant 0 : i32
    return %c0_i32, %c0_i32_0 : i32, i32
  }
  func.func @transform_10(%arg0: i32) -> (i32, i32) {
    %c0_i32 = arith.constant 0 : i32
    %c0_i32_0 = arith.constant 0 : i32
    %c0_i32_1 = arith.constant 0 : i32
    return %c0_i32, %c0_i32_0 : i32, i32
  }
  func.func @transform_11(%arg0: i32) -> (i32, i32) {
    %c0_i32 = arith.constant 0 : i32
    %c0_i32_0 = arith.constant 0 : i32
    %c0_i32_1 = arith.constant 0 : i32
    return %c0_i32, %c0_i32_0 : i32, i32
  }
  func.func @transform_12(%arg0: i32) -> (i32, i32) {
    %c0_i32 = arith.constant 0 : i32
    %c0_i32_0 = arith.constant 0 : i32
    return %arg0, %c0_i32 : i32, i32
  }
}

</mosaic_0001>

<llo_original>
// kernel: tpu_custom_call.1
$region0: #{tpu_custom_call.1}
  #allocation0 [shape = 'u32[]', space=smem, size = 0x4, offset = 0x4, fixed_abs, tag = 'smem constant byte address 0x4 - core index']
  #allocation1 [shape = 'u32[144,128]{1,0:T(1,128)}', space=vmem, size = 0x12000, scoped, tag = 'internal scratch']
  %s0 = inlined_call_operand.hbm [shape: f32[128,128], index: 0, kind: input, shape index: {}]
  %s1 = inlined_call_operand.hbm [shape: f32[128,128], index: 1, kind: input, shape index: {}]
  %s2 = inlined_call_operand.vmem [shape: f32[1,128], index: 2, kind: input, shape index: {}]
  %s3 = inlined_call_operand.hbm [shape: f32[128,128], index: 3, kind: input, shape index: {}]
  %s4 = inlined_call_operand.vmem [shape: f32[1,128], index: 4, kind: input, shape index: {}]
  %s5 = inlined_call_operand.hbm [shape: f32[128,384], index: 5, kind: input, shape index: {}]
  %s6 = inlined_call_operand.vmem [shape: f32[1,128], index: 6, kind: input, shape index: {}]
  %s7 = inlined_call_operand.hbm [shape: f32[128,384], index: 7, kind: input, shape index: {}]
  %s8 = inlined_call_operand.vmem [shape: f32[1,128], index: 8, kind: input, shape index: {}]
  %s9 = inlined_call_operand.hbm [shape: f32[128,128], index: 9, kind: input, shape index: {}]
  %s10 = inlined_call_operand.vmem [shape: f32[1,128], index: 10, kind: input, shape index: {}]
  %s11 = inlined_call_operand.hbm [shape: f32[128,512], index: 11, kind: input, shape index: {}]
  %s12 = inlined_call_operand.hbm [shape: f32[128,128], index: 12, kind: output, shape index: {}]
  %s13 = sld [smem:[#allocation0]]
  $region86: #{tpu_custom_call.1} parent=0
    _
  %s15 = ssub.s32 1, %s13
  %s16 = scalar_select 0, %s15, %s13
  $region1: #{tpu_custom_call.1} parent=0
    #allocation2 [shape = 'u8[65536]{0}', space=vmem, size = 0x10000, scoped, tag = 'input window, operand 0, single buffered']
    #allocation3 [shape = 's32[1]{0}', space=sflag, size = 0x4, scoped, tag = 'scoped memory for tpu_custom_call.1']
    #allocation4 [shape = 's32[1]{0}', space=sflag, size = 0x4, scoped, tag = 'scoped memory for tpu_custom_call.1']
    #allocation5 [shape = 'u8[65536]{0}', space=vmem, size = 0x10000, scoped, tag = 'input window, operand 1, single buffered']
    #allocation6 [shape = 's32[1]{0}', space=sflag, size = 0x4, scoped, tag = 'scoped memory for tpu_custom_call.1']
    #allocation7 [shape = 'u8[65536]{0}', space=vmem, size = 0x10000, scoped, tag = 'input window, operand 3, single buffered']
    #allocation8 [shape = 'u8[196608]{0}', space=vmem, size = 0x30000, scoped, tag = 'input window, operand 5, single buffered']
    #allocation9 [shape = 's32[1]{0}', space=sflag, size = 0x4, scoped, tag = 'scoped memory for tpu_custom_call.1']
    #allocation10 [shape = 'u8[196608]{0}', space=vmem, size = 0x30000, scoped, tag = 'input window, operand 7, single buffered']
    #allocation11 [shape = 'u8[65536]{0}', space=vmem, size = 0x10000, scoped, tag = 'input window, operand 9, single buffered']
    #allocation12 [shape = 's32[1]{0}', space=sflag, size = 0x4, scoped, tag = 'scoped memory for tpu_custom_call.1']
    #allocation13 [shape = 'u8[262144]{0}', space=vmem, size = 0x40000, scoped, tag = 'input window, operand 11, single buffered']
    #allocation14 [shape = 'u8[65536]{0}', space=vmem, size = 0x10000, scoped, tag = 'output window, operand 0, single buffered']
    %17 = vsyncpa [#allocation3], 0
    %18 = vsyncpa [#allocation6], 0
    %19 = vsyncpa [#allocation9], 0
    %20 = vsyncpa [#allocation12], 0
    %21 = vsyncpa [#allocation4], 0
    // Predicated region
    $region2: #{tpu_custom_call.1} parent=1 // pred_check
      _
    $region3: #{tpu_custom_call.1} parent=1 // pred_check_branch
      %23 = sbr.rel (0) target = $region5
    $region4: #{tpu_custom_call.1} parent=1 // pred_region
      %s25 = ssub.s32 2048, 2048
      %26 = vsyncadd [#allocation3], %s25
      %s27 = sshll.u32 [#allocation2], 4
      %s28 = int_to_ptr.vmem [resolvable:$true] %s27
      %33 = dma.hbm_to_vmem [thread:$0]  %s0, 2048, %s28, [#allocation3], 128, 128, 8
    $region5: #{tpu_custom_call.1} parent=1 // pred_fallthru
      _
    // Predicated region
    $region6: #{tpu_custom_call.1} parent=1 // pred_check
      _
    $region7: #{tpu_custom_call.1} parent=1 // pred_check_branch
      %35 = sbr.rel (0) target = $region9
    $region8: #{tpu_custom_call.1} parent=1 // pred_region
      %s37 = ssub.s32 2048, 2048
      %38 = vsyncadd [#allocation6], %s37
      %s39 = sshll.u32 [#allocation5], 4
      %s40 = int_to_ptr.vmem [resolvable:$true] %s39
      %45 = dma.hbm_to_vmem [thread:$0]  %s1, 2048, %s40, [#allocation6], 128, 128, 8
    $region9: #{tpu_custom_call.1} parent=1 // pred_fallthru
      _
    // Predicated region
    $region10: #{tpu_custom_call.1} parent=1 // pred_check
      _
    $region11: #{tpu_custom_call.1} parent=1 // pred_check_branch
      %47 = sbr.rel (0) target = $region13
    $region12: #{tpu_custom_call.1} parent=1 // pred_region
      _
    $region13: #{tpu_custom_call.1} parent=1 // pred_fallthru
      _
    // Predicated region
    $region14: #{tpu_custom_call.1} parent=1 // pred_check
      _
    $region15: #{tpu_custom_call.1} parent=1 // pred_check_branch
      %49 = sbr.rel (0) target = $region17
    $region16: #{tpu_custom_call.1} parent=1 // pred_region
      %s51 = ssub.s32 2048, 2048
      %52 = vsyncadd [#allocation6], %s51
      %s53 = sshll.u32 [#allocation7], 4
      %s54 = int_to_ptr.vmem [resolvable:$true] %s53
      %59 = dma.hbm_to_vmem [thread:$0]  %s3, 2048, %s54, [#allocation6], 128, 128, 8
    $region17: #{tpu_custom_call.1} parent=1 // pred_fallthru
      _
    // Predicated region
    $region18: #{tpu_custom_call.1} parent=1 // pred_check
      _
    $region19: #{tpu_custom_call.1} parent=1 // pred_check_branch
      %61 = sbr.rel (0) target = $region21
    $region20: #{tpu_custom_call.1} parent=1 // pred_region
      _
    $region21: #{tpu_custom_call.1} parent=1 // pred_fallthru
      _
    // Predicated region
    $region22: #{tpu_custom_call.1} parent=1 // pred_check
      _
    $region23: #{tpu_custom_call.1} parent=1 // pred_check_branch
      %63 = sbr.rel (0) target = $region25
    $region24: #{tpu_custom_call.1} parent=1 // pred_region
      %s65 = ssub.s32 6144, 6144
      %66 = vsyncadd [#allocation9], %s65
      %s67 = sshll.u32 [#allocation8], 4
      %s68 = int_to_ptr.vmem [resolvable:$true] %s67
      %73 = dma.hbm_to_vmem [thread:$0]  %s5, 6144, %s68, [#allocation9], 384, 384, 24
    $region25: #{tpu_custom_call.1} parent=1 // pred_fallthru
      _
    // Predicated region
    $region26: #{tpu_custom_call.1} parent=1 // pred_check
      _
    $region27: #{tpu_custom_call.1} parent=1 // pred_check_branch
      %75 = sbr.rel (0) target = $region29
    $region28: #{tpu_custom_call.1} parent=1 // pred_region
      _
    $region29: #{tpu_custom_call.1} parent=1 // pred_fallthru
      _
    // Predicated region
    $region30: #{tpu_custom_call.1} parent=1 // pred_check
      _
    $region31: #{tpu_custom_call.1} parent=1 // pred_check_branch
      %77 = sbr.rel (0) target = $region33
    $region32: #{tpu_custom_call.1} parent=1 // pred_region
      %s79 = ssub.s32 6144, 6144
      %80 = vsyncadd [#allocation9], %s79
      %s81 = sshll.u32 [#allocation10], 4
      %s82 = int_to_ptr.vmem [resolvable:$true] %s81
      %87 = dma.hbm_to_vmem [thread:$0]  %s7, 6144, %s82, [#allocation9], 384, 384, 24
    $region33: #{tpu_custom_call.1} parent=1 // pred_fallthru
      _
    // Predicated region
    $region34: #{tpu_custom_call.1} parent=1 // pred_check
      _
    $region35: #{tpu_custom_call.1} parent=1 // pred_check_branch
      %89 = sbr.rel (0) target = $region37
    $region36: #{tpu_custom_call.1} parent=1 // pred_region
      _
    $region37: #{tpu_custom_call.1} parent=1 // pred_fallthru
      _
    // Predicated region
    $region38: #{tpu_custom_call.1} parent=1 // pred_check
      _
    $region39: #{tpu_custom_call.1} parent=1 // pred_check_branch
      %91 = sbr.rel (0) target = $region41
    $region40: #{tpu_custom_call.1} parent=1 // pred_region
      %s93 = ssub.s32 2048, 2048
      %94 = vsyncadd [#allocation12], %s93
      %s95 = sshll.u32 [#allocation11], 4
      %s96 = int_to_ptr.vmem [resolvable:$true] %s95
      %101 = dma.hbm_to_vmem [thread:$0]  %s9, 2048, %s96, [#allocation12], 128, 128, 8
    $region41: #{tpu_custom_call.1} parent=1 // pred_fallthru
      _
    // Predicated region
    $region42: #{tpu_custom_call.1} parent=1 // pred_check
      _
    $region43: #{tpu_custom_call.1} parent=1 // pred_check_branch
      %103 = sbr.rel (0) target = $region45
    $region44: #{tpu_custom_call.1} parent=1 // pred_region
      _
    $region45: #{tpu_custom_call.1} parent=1 // pred_fallthru
      _
    // Predicated region
    $region46: #{tpu_custom_call.1} parent=1 // pred_check
      _
    $region47: #{tpu_custom_call.1} parent=1 // pred_check_branch
      %105 = sbr.rel (0) target = $region49
    $region48: #{tpu_custom_call.1} parent=1 // pred_region
      %s107 = ssub.s32 8192, 8192
      %108 = vsyncadd [#allocation12], %s107
      %s109 = sshll.u32 [#allocation13], 4
      %s110 = int_to_ptr.vmem [resolvable:$true] %s109
      %115 = dma.hbm_to_vmem [thread:$0]  %s11, 8192, %s110, [#allocation12], 512, 512, 32
    $region49: #{tpu_custom_call.1} parent=1 // pred_fallthru
      _
    // Predicated region
    $region50: #{tpu_custom_call.1} parent=1 // pred_check
      _
    $region51: #{tpu_custom_call.1} parent=1 // pred_check_branch
      %117 = sbr.rel (0) target = $region53
    $region52: #{tpu_custom_call.1} parent=1 // pred_region
      %118 = dma.done [#allocation3], 2048
    $region53: #{tpu_custom_call.1} parent=1 // pred_fallthru
      _
    // Predicated region
    $region54: #{tpu_custom_call.1} parent=1 // pred_check
      _
    $region55: #{tpu_custom_call.1} parent=1 // pred_check_branch
      %120 = sbr.rel (0) target = $region57
    $region56: #{tpu_custom_call.1} parent=1 // pred_region
      %121 = dma.done [#allocation6], 2048
    $region57: #{tpu_custom_call.1} parent=1 // pred_fallthru
      _
    // Predicated region
    $region58: #{tpu_custom_call.1} parent=1 // pred_check
      _
    $region59: #{tpu_custom_call.1} parent=1 // pred_check_branch
      %123 = sbr.rel (0) target = $region61
    $region60: #{tpu_custom_call.1} parent=1 // pred_region
      %124 = dma.done [#allocation6], 2048
    $region61: #{tpu_custom_call.1} parent=1 // pred_fallthru
      _
    // Predicated region
    $region62: #{tpu_custom_call.1} parent=1 // pred_check
      _
    $region63: #{tpu_custom_call.1} parent=1 // pred_check_branch
      %126 = sbr.rel (0) target = $region65
    $region64: #{tpu_custom_call.1} parent=1 // pred_region
      %127 = dma.done [#allocation9], 6144
    $region65: #{tpu_custom_call.1} parent=1 // pred_fallthru
      _
    // Predicated region
    $region66: #{tpu_custom_call.1} parent=1 // pred_check
      _
    $region67: #{tpu_custom_call.1} parent=1 // pred_check_branch
      %129 = sbr.rel (0) target = $region69
    $region68: #{tpu_custom_call.1} parent=1 // pred_region
      %130 = dma.done [#allocation9], 6144
    $region69: #{tpu_custom_call.1} parent=1 // pred_fallthru
      _
    // Predicated region
    $region70: #{tpu_custom_call.1} parent=1 // pred_check
      _
    $region71: #{tpu_custom_call.1} parent=1 // pred_check_branch
      %132 = sbr.rel (0) target = $region73
    $region72: #{tpu_custom_call.1} parent=1 // pred_region
      %133 = dma.done [#allocation12], 2048
    $region73: #{tpu_custom_call.1} parent=1 // pred_fallthru
      _
    // Predicated region
    $region74: #{tpu_custom_call.1} parent=1 // pred_check
      _
    $region75: #{tpu_custom_call.1} parent=1 // pred_check_branch
      %135 = sbr.rel (0) target = $region77
    $region76: #{tpu_custom_call.1} parent=1 // pred_region
      %136 = dma.done [#allocation12], 8192
    $region77: #{tpu_custom_call.1} parent=1 // pred_fallthru
      _
    %v137 = vld [vmem:[#allocation2] sm:$0xff]
    %v138 = vld [vmem:[#allocation2 + $0x8] sm:$0xff]
    %v139 = vld [vmem:[#allocation2 + $0x10] sm:$0xff]
    %v140 = vld [vmem:[#allocation2 + $0x18] sm:$0xff]
    %v141 = vld [vmem:[#allocation2 + $0x20] sm:$0xff]
    %v142 = vld [vmem:[#allocation2 + $0x28] sm:$0xff]
    %v143 = vld [vmem:[#allocation2 + $0x30] sm:$0xff]
    %v144 = vld [vmem:[#allocation2 + $0x38] sm:$0xff]
    %v145 = vld [vmem:[#allocation2 + $0x40] sm:$0xff]
    %v146 = vld [vmem:[#allocation2 + $0x48] sm:$0xff]
    %v147 = vld [vmem:[#allocation2 + $0x50] sm:$0xff]
    %v148 = vld [vmem:[#allocation2 + $0x58] sm:$0xff]
    %v149 = vld [vmem:[#allocation2 + $0x60] sm:$0xff]
    %v150 = vld [vmem:[#allocation2 + $0x68] sm:$0xff]
    %v151 = vld [vmem:[#allocation2 + $0x70] sm:$0xff]
    %v152 = vld [vmem:[#allocation2 + $0x78] sm:$0xff]
    %v153 = vld [vmem:[#allocation5] sm:$0xff]
    %v154 = vld [vmem:[#allocation5 + $0x8] sm:$0xff]
    %v155 = vld [vmem:[#allocation5 + $0x10] sm:$0xff]
    %v156 = vld [vmem:[#allocation5 + $0x18] sm:$0xff]
    %v157 = vld [vmem:[#allocation5 + $0x20] sm:$0xff]
    %v158 = vld [vmem:[#allocation5 + $0x28] sm:$0xff]
    %v159 = vld [vmem:[#allocation5 + $0x30] sm:$0xff]
    %v160 = vld [vmem:[#allocation5 + $0x38] sm:$0xff]
    %v161 = vld [vmem:[#allocation5 + $0x40] sm:$0xff]
    %v162 = vld [vmem:[#allocation5 + $0x48] sm:$0xff]
    %v163 = vld [vmem:[#allocation5 + $0x50] sm:$0xff]
    %v164 = vld [vmem:[#allocation5 + $0x58] sm:$0xff]
    %v165 = vld [vmem:[#allocation5 + $0x60] sm:$0xff]
    %v166 = vld [vmem:[#allocation5 + $0x68] sm:$0xff]
    %v167 = vld [vmem:[#allocation5 + $0x70] sm:$0xff]
    %v168 = vld [vmem:[#allocation5 + $0x78] sm:$0xff]
    %v169 = vld [vmem:[%s2] sm:$0x1]
    %v171 = vlaneseq
    %v172 = vshrl.u32 %v171, 7
    %v173 = vsub.s32 0, %v172
    %v174 = vrot.slane %v169, %v173
    %176 = vmatprep.subr.mxu0 0.0
    %177 = vmatpush1.msra.mxu0 %v168
    %178 = vmatprep.subr.mxu0 0.0
    %179 = vmatpush1.msra.mxu0 %v167
    %180 = vmatprep.subr.mxu0 0.0
    %181 = vmatpush1.msra.mxu0 %v166
    %182 = vmatprep.subr.mxu0 0.0
    %183 = vmatpush1.msra.mxu0 %v165
    %184 = vmatprep.subr.mxu0 0.0
    %185 = vmatpush1.msra.mxu0 %v164
    %186 = vmatprep.subr.mxu0 0.0
    %187 = vmatpush1.msra.mxu0 %v163
    %188 = vmatprep.subr.mxu0 0.0
    %189 = vmatpush1.msra.mxu0 %v162
    %190 = vmatprep.subr.mxu0 0.0
    %191 = vmatpush1.msra.mxu0 %v161
    %192 = vmatprep.subr.mxu0 0.0
    %193 = vmatpush1.msra.mxu0 %v160
    %194 = vmatprep.subr.mxu0 0.0
    %195 = vmatpush1.msra.mxu0 %v159
    %196 = vmatprep.subr.mxu0 0.0
    %197 = vmatpush1.msra.mxu0 %v158
    %198 = vmatprep.subr.mxu0 0.0
    %199 = vmatpush1.msra.mxu0 %v157
    %200 = vmatprep.subr.mxu0 0.0
    %201 = vmatpush1.msra.mxu0 %v156
    %202 = vmatprep.subr.mxu0 0.0
    %203 = vmatpush1.msra.mxu0 %v155
    %204 = vmatprep.subr.mxu0 0.0
    %205 = vmatpush1.msra.mxu0 %v154
    %206 = vmatprep.subr.mxu0 0.0
    %207 = vmatpush1.msra.mxu0 %v153
    %208 = vmatprep.subr.mxu0 0.0
    %209 = vmatpush2.msra.mxu0 0.0
    %210 = vmatprep.subr.mxu0 0.0
    %211 = vmatpush2.msra.mxu0 0.0
    %212 = vmatprep.subr.mxu0 0.0
    %213 = vmatpush2.msra.mxu0 0.0
    %214 = vmatprep.subr.mxu0 0.0
    %215 = vmatpush2.msra.mxu0 0.0
    %216 = vmatprep.subr.mxu0 0.0
    %217 = vmatpush2.msra.mxu0 0.0
    %218 = vmatprep.subr.mxu0 0.0
    %219 = vmatpush2.msra.mxu0 0.0
    %220 = vmatprep.subr.mxu0 0.0
    %221 = vmatpush2.msra.mxu0 0.0
    %222 = vmatprep.subr.mxu0 0.0
    %223 = vmatpush2.msra.mxu0 0.0
    %224 = vmatprep.subr.mxu0 0.0
    %225 = vmatpush2.msra.mxu0 0.0
    %226 = vmatprep.subr.mxu0 0.0
    %227 = vmatpush2.msra.mxu0 0.0
    %228 = vmatprep.subr.mxu0 0.0
    %229 = vmatpush2.msra.mxu0 0.0
    %230 = vmatprep.subr.mxu0 0.0
    %231 = vmatpush2.msra.mxu0 0.0
    %232 = vmatprep.subr.mxu0 0.0
    %233 = vmatpush2.msra.mxu0 0.0
    %234 = vmatprep.subr.mxu0 0.0
    %235 = vmatpush2.msra.mxu0 0.0
    %236 = vmatprep.subr.mxu0 0.0
    %237 = vmatpush2.msra.mxu0 0.0
    %238 = vmatprep.subr.mxu0 0.0
    %239 = vmatpush2.msra.mxu0 0.0
    %240 = vmatprep.mubr.f32.mxu0 0.0
    %241 = vmatmul.mubr.f32.gmra.mxu0 %v137
    %v242 = vpop.f32.mrf.mxu0
    %v243 = vadd.f32 %v174, %v242
    %v244 = vpop.f32.mrf.mxu0
    %245 = vmatprep.mubr.f32.mxu0 0.0
    %246 = vmatmul.mubr.f32.gmra.mxu0 %v138
    %v247 = vpop.f32.mrf.mxu0
    %v248 = vadd.f32 %v174, %v247
    %v249 = vpop.f32.mrf.mxu0
    %250 = vmatprep.mubr.f32.mxu0 0.0
    %251 = vmatmul.mubr.f32.gmra.mxu0 %v139
    %v252 = vpop.f32.mrf.mxu0
    %v253 = vadd.f32 %v174, %v252
    %v254 = vpop.f32.mrf.mxu0
    %255 = vmatprep.mubr.f32.mxu0 0.0
    %256 = vmatmul.mubr.f32.gmra.mxu0 %v140
    %v257 = vpop.f32.mrf.mxu0
    %v258 = vadd.f32 %v174, %v257
    %v259 = vpop.f32.mrf.mxu0
    %260 = vmatprep.mubr.f32.mxu0 0.0
    %261 = vmatmul.mubr.f32.gmra.mxu0 %v141
    %v262 = vpop.f32.mrf.mxu0
    %v263 = vadd.f32 %v174, %v262
    %v264 = vpop.f32.mrf.mxu0
    %265 = vmatprep.mubr.f32.mxu0 0.0
    %266 = vmatmul.mubr.f32.gmra.mxu0 %v142
    %v267 = vpop.f32.mrf.mxu0
    %v268 = vadd.f32 %v174, %v267
    %v269 = vpop.f32.mrf.mxu0
    %270 = vmatprep.mubr.f32.mxu0 0.0
    %271 = vmatmul.mubr.f32.gmra.mxu0 %v143
    %v272 = vpop.f32.mrf.mxu0
    %v273 = vadd.f32 %v174, %v272
    %v274 = vpop.f32.mrf.mxu0
    %275 = vmatprep.mubr.f32.mxu0 0.0
    %276 = vmatmul.mubr.f32.gmra.mxu0 %v144
    %v277 = vpop.f32.mrf.mxu0
    %v278 = vadd.f32 %v174, %v277
    %v279 = vpop.f32.mrf.mxu0
    %280 = vmatprep.mubr.f32.mxu0 0.0
    %281 = vmatmul.mubr.f32.gmra.mxu0 %v145
    %v282 = vpop.f32.mrf.mxu0
    %v283 = vadd.f32 %v174, %v282
    %v284 = vpop.f32.mrf.mxu0
    %285 = vmatprep.mubr.f32.mxu0 0.0
    %286 = vmatmul.mubr.f32.gmra.mxu0 %v146
    %v287 = vpop.f32.mrf.mxu0
    %v288 = vadd.f32 %v174, %v287
    %v289 = vpop.f32.mrf.mxu0
    %290 = vmatprep.mubr.f32.mxu0 0.0
    %291 = vmatmul.mubr.f32.gmra.mxu0 %v147
    %v292 = vpop.f32.mrf.mxu0
    %v293 = vadd.f32 %v174, %v292
    %v294 = vpop.f32.mrf.mxu0
    %295 = vmatprep.mubr.f32.mxu0 0.0
    %296 = vmatmul.mubr.f32.gmra.mxu0 %v148
    %v297 = vpop.f32.mrf.mxu0
    %v298 = vadd.f32 %v174, %v297
    %v299 = vpop.f32.mrf.mxu0
    %300 = vmatprep.mubr.f32.mxu0 0.0
    %301 = vmatmul.mubr.f32.gmra.mxu0 %v149
    %v302 = vpop.f32.mrf.mxu0
    %v303 = vadd.f32 %v174, %v302
    %v304 = vpop.f32.mrf.mxu0
    %305 = vmatprep.mubr.f32.mxu0 0.0
    %306 = vmatmul.mubr.f32.gmra.mxu0 %v150
    %v307 = vpop.f32.mrf.mxu0
    %v308 = vadd.f32 %v174, %v307
    %v309 = vpop.f32.mrf.mxu0
    %310 = vmatprep.mubr.f32.mxu0 0.0
    %311 = vmatmul.mubr.f32.gmra.mxu0 %v151
    %v312 = vpop.f32.mrf.mxu0
    %v313 = vadd.f32 %v174, %v312
    %v314 = vpop.f32.mrf.mxu0
    %315 = vmatprep.mubr.f32.mxu0 0.0
    %316 = vmatmul.mubr.f32.gmra.mxu0 %v152
    %v317 = vpop.f32.mrf.mxu0
    %v318 = vadd.f32 %v174, %v317
    %v319 = vpop.f32.mrf.mxu0
    %320 = vdwg.mxu0
    %v321 = vmax.f32 %v243, 0.0
    %v322 = vmax.f32 %v248, 0.0
    %v323 = vmax.f32 %v253, 0.0
    %v324 = vmax.f32 %v258, 0.0
    %v325 = vmax.f32 %v263, 0.0
    %v326 = vmax.f32 %v268, 0.0
    %v327 = vmax.f32 %v273, 0.0
    %v328 = vmax.f32 %v278, 0.0
    %v329 = vmax.f32 %v283, 0.0
    %v330 = vmax.f32 %v288, 0.0
    %v331 = vmax.f32 %v293, 0.0
    %v332 = vmax.f32 %v298, 0.0
    %v333 = vmax.f32 %v303, 0.0
    %v334 = vmax.f32 %v308, 0.0
    %v335 = vmax.f32 %v313, 0.0
    %v336 = vmax.f32 %v318, 0.0
    %v337 = vld [vmem:[#allocation7] sm:$0xff]
    %v338 = vld [vmem:[#allocation7 + $0x8] sm:$0xff]
    %v339 = vld [vmem:[#allocation7 + $0x10] sm:$0xff]
    %v340 = vld [vmem:[#allocation7 + $0x18] sm:$0xff]
    %v341 = vld [vmem:[#allocation7 + $0x20] sm:$0xff]
    %v342 = vld [vmem:[#allocation7 + $0x28] sm:$0xff]
    %v343 = vld [vmem:[#allocation7 + $0x30] sm:$0xff]
    %v344 = vld [vmem:[#allocation7 + $0x38] sm:$0xff]
    %v345 = vld [vmem:[#allocation7 + $0x40] sm:$0xff]
    %v346 = vld [vmem:[#allocation7 + $0x48] sm:$0xff]
    %v347 = vld [vmem:[#allocation7 + $0x50] sm:$0xff]
    %v348 = vld [vmem:[#allocation7 + $0x58] sm:$0xff]
    %v349 = vld [vmem:[#allocation7 + $0x60] sm:$0xff]
    %v350 = vld [vmem:[#allocation7 + $0x68] sm:$0xff]
    %v351 = vld [vmem:[#allocation7 + $0x70] sm:$0xff]
    %v352 = vld [vmem:[#allocation7 + $0x78] sm:$0xff]
    %v353 = vld [vmem:[%s4] sm:$0x1]
    %v355 = vlaneseq
    %v356 = vshrl.u32 %v355, 7
    %v357 = vsub.s32 0, %v356
    %v358 = vrot.slane %v353, %v357
    %360 = vmatprep.subr.mxu0 0.0
    %361 = vmatpush1.msra.mxu0 %v352
    %362 = vmatprep.subr.mxu0 0.0
    %363 = vmatpush1.msra.mxu0 %v351
    %364 = vmatprep.subr.mxu0 0.0
    %365 = vmatpush1.msra.mxu0 %v350
    %366 = vmatprep.subr.mxu0 0.0
    %367 = vmatpush1.msra.mxu0 %v349
    %368 = vmatprep.subr.mxu0 0.0
    %369 = vmatpush1.msra.mxu0 %v348
    %370 = vmatprep.subr.mxu0 0.0
    %371 = vmatpush1.msra.mxu0 %v347
    %372 = vmatprep.subr.mxu0 0.0
    %373 = vmatpush1.msra.mxu0 %v346
    %374 = vmatprep.subr.mxu0 0.0
    %375 = vmatpush1.msra.mxu0 %v345
    %376 = vmatprep.subr.mxu0 0.0
    %377 = vmatpush1.msra.mxu0 %v344
    %378 = vmatprep.subr.mxu0 0.0
    %379 = vmatpush1.msra.mxu0 %v343
    %380 = vmatprep.subr.mxu0 0.0
    %381 = vmatpush1.msra.mxu0 %v342
    %382 = vmatprep.subr.mxu0 0.0
    %383 = vmatpush1.msra.mxu0 %v341
    %384 = vmatprep.subr.mxu0 0.0
    %385 = vmatpush1.msra.mxu0 %v340
    %386 = vmatprep.subr.mxu0 0.0
    %387 = vmatpush1.msra.mxu0 %v339
    %388 = vmatprep.subr.mxu0 0.0
    %389 = vmatpush1.msra.mxu0 %v338
    %390 = vmatprep.subr.mxu0 0.0
    %391 = vmatpush1.msra.mxu0 %v337
    %392 = vmatprep.subr.mxu0 0.0
    %393 = vmatpush2.msra.mxu0 0.0
    %394 = vmatprep.subr.mxu0 0.0
    %395 = vmatpush2.msra.mxu0 0.0
    %396 = vmatprep.subr.mxu0 0.0
    %397 = vmatpush2.msra.mxu0 0.0
    %398 = vmatprep.subr.mxu0 0.0
    %399 = vmatpush2.msra.mxu0 0.0
    %400 = vmatprep.subr.mxu0 0.0
    %401 = vmatpush2.msra.mxu0 0.0
    %402 = vmatprep.subr.mxu0 0.0
    %403 = vmatpush2.msra.mxu0 0.0
    %404 = vmatprep.subr.mxu0 0.0
    %405 = vmatpush2.msra.mxu0 0.0
    %406 = vmatprep.subr.mxu0 0.0
    %407 = vmatpush2.msra.mxu0 0.0
    %408 = vmatprep.subr.mxu0 0.0
    %409 = vmatpush2.msra.mxu0 0.0
    %410 = vmatprep.subr.mxu0 0.0
    %411 = vmatpush2.msra.mxu0 0.0
    %412 = vmatprep.subr.mxu0 0.0
    %413 = vmatpush2.msra.mxu0 0.0
    %414 = vmatprep.subr.mxu0 0.0
    %415 = vmatpush2.msra.mxu0 0.0
    %416 = vmatprep.subr.mxu0 0.0
    %417 = vmatpush2.msra.mxu0 0.0
    %418 = vmatprep.subr.mxu0 0.0
    %419 = vmatpush2.msra.mxu0 0.0
    %420 = vmatprep.subr.mxu0 0.0
    %421 = vmatpush2.msra.mxu0 0.0
    %422 = vmatprep.subr.mxu0 0.0
    %423 = vmatpush2.msra.mxu0 0.0
    %424 = vmatprep.mubr.f32.mxu0 0.0
    %425 = vmatmul.mubr.f32.gmra.mxu0 %v321
    %v426 = vpop.f32.mrf.mxu0
    %v427 = vadd.f32 %v358, %v426
    %v428 = vpop.f32.mrf.mxu0
    %429 = vmatprep.mubr.f32.mxu0 0.0
    %430 = vmatmul.mubr.f32.gmra.mxu0 %v322
    %v431 = vpop.f32.mrf.mxu0
    %v432 = vadd.f32 %v358, %v431
    %v433 = vpop.f32.mrf.mxu0
    %434 = vmatprep.mubr.f32.mxu0 0.0
    %435 = vmatmul.mubr.f32.gmra.mxu0 %v323
    %v436 = vpop.f32.mrf.mxu0
    %v437 = vadd.f32 %v358, %v436
    %v438 = vpop.f32.mrf.mxu0
    %439 = vmatprep.mubr.f32.mxu0 0.0
    %440 = vmatmul.mubr.f32.gmra.mxu0 %v324
    %v441 = vpop.f32.mrf.mxu0
    %v442 = vadd.f32 %v358, %v441
    %v443 = vpop.f32.mrf.mxu0
    %444 = vmatprep.mubr.f32.mxu0 0.0
    %445 = vmatmul.mubr.f32.gmra.mxu0 %v325
    %v446 = vpop.f32.mrf.mxu0
    %v447 = vadd.f32 %v358, %v446
    %v448 = vpop.f32.mrf.mxu0
    %449 = vmatprep.mubr.f32.mxu0 0.0
    %450 = vmatmul.mubr.f32.gmra.mxu0 %v326
    %v451 = vpop.f32.mrf.mxu0
    %v452 = vadd.f32 %v358, %v451
    %v453 = vpop.f32.mrf.mxu0
    %454 = vmatprep.mubr.f32.mxu0 0.0
    %455 = vmatmul.mubr.f32.gmra.mxu0 %v327
    %v456 = vpop.f32.mrf.mxu0
    %v457 = vadd.f32 %v358, %v456
    %v458 = vpop.f32.mrf.mxu0
    %459 = vmatprep.mubr.f32.mxu0 0.0
    %460 = vmatmul.mubr.f32.gmra.mxu0 %v328
    %v461 = vpop.f32.mrf.mxu0
    %v462 = vadd.f32 %v358, %v461
    %v463 = vpop.f32.mrf.mxu0
    %464 = vmatprep.mubr.f32.mxu0 0.0
    %465 = vmatmul.mubr.f32.gmra.mxu0 %v329
    %v466 = vpop.f32.mrf.mxu0
    %v467 = vadd.f32 %v358, %v466
    %v468 = vpop.f32.mrf.mxu0
    %469 = vmatprep.mubr.f32.mxu0 0.0
    %470 = vmatmul.mubr.f32.gmra.mxu0 %v330
    %v471 = vpop.f32.mrf.mxu0
    %v472 = vadd.f32 %v358, %v471
    %v473 = vpop.f32.mrf.mxu0
    %474 = vmatprep.mubr.f32.mxu0 0.0
    %475 = vmatmul.mubr.f32.gmra.mxu0 %v331
    %v476 = vpop.f32.mrf.mxu0
    %v477 = vadd.f32 %v358, %v476
    %v478 = vpop.f32.mrf.mxu0
    %479 = vmatprep.mubr.f32.mxu0 0.0
    %480 = vmatmul.mubr.f32.gmra.mxu0 %v332
    %v481 = vpop.f32.mrf.mxu0
    %v482 = vadd.f32 %v358, %v481
    %v483 = vpop.f32.mrf.mxu0
    %484 = vmatprep.mubr.f32.mxu0 0.0
    %485 = vmatmul.mubr.f32.gmra.mxu0 %v333
    %v486 = vpop.f32.mrf.mxu0
    %v487 = vadd.f32 %v358, %v486
    %v488 = vpop.f32.mrf.mxu0
    %489 = vmatprep.mubr.f32.mxu0 0.0
    %490 = vmatmul.mubr.f32.gmra.mxu0 %v334
    %v491 = vpop.f32.mrf.mxu0
    %v492 = vadd.f32 %v358, %v491
    %v493 = vpop.f32.mrf.mxu0
    %494 = vmatprep.mubr.f32.mxu0 0.0
    %495 = vmatmul.mubr.f32.gmra.mxu0 %v335
    %v496 = vpop.f32.mrf.mxu0
    %v497 = vadd.f32 %v358, %v496
    %v498 = vpop.f32.mrf.mxu0
    %499 = vmatprep.mubr.f32.mxu0 0.0
    %500 = vmatmul.mubr.f32.gmra.mxu0 %v336
    %v501 = vpop.f32.mrf.mxu0
    %v502 = vadd.f32 %v358, %v501
    %v503 = vpop.f32.mrf.mxu0
    %504 = vdwg.mxu0
    %v505 = vmax.f32 %v427, 0.0
    %v506 = vmax.f32 %v432, 0.0
    %v507 = vmax.f32 %v437, 0.0
    %v508 = vmax.f32 %v442, 0.0
    %v509 = vmax.f32 %v447, 0.0
    %v510 = vmax.f32 %v452, 0.0
    %v511 = vmax.f32 %v457, 0.0
    %v512 = vmax.f32 %v462, 0.0
    %v513 = vmax.f32 %v467, 0.0
    %v514 = vmax.f32 %v472, 0.0
    %v515 = vmax.f32 %v477, 0.0
    %v516 = vmax.f32 %v482, 0.0
    %v517 = vmax.f32 %v487, 0.0
    %v518 = vmax.f32 %v492, 0.0
    %v519 = vmax.f32 %v497, 0.0
    %v520 = vmax.f32 %v502, 0.0
    %v521 = vld [vmem:[#allocation8] sm:$0xff]
    %v522 = vld [vmem:[#allocation8 + $0x8] sm:$0xff]
    %v523 = vld [vmem:[#allocation8 + $0x10] sm:$0xff]
    %v524 = vld [vmem:[#allocation8 + $0x18] sm:$0xff]
    %v525 = vld [vmem:[#allocation8 + $0x20] sm:$0xff]
    %v526 = vld [vmem:[#allocation8 + $0x28] sm:$0xff]
    %v527 = vld [vmem:[#allocation8 + $0x30] sm:$0xff]
    %v528 = vld [vmem:[#allocation8 + $0x38] sm:$0xff]
    %v529 = vld [vmem:[#allocation8 + $0x40] sm:$0xff]
    %v530 = vld [vmem:[#allocation8 + $0x48] sm:$0xff]
    %v531 = vld [vmem:[#allocation8 + $0x50] sm:$0xff]
    %v532 = vld [vmem:[#allocation8 + $0x58] sm:$0xff]
    %v533 = vld [vmem:[#allocation8 + $0x60] sm:$0xff]
    %v534 = vld [vmem:[#allocation8 + $0x68] sm:$0xff]
    %v535 = vld [vmem:[#allocation8 + $0x70] sm:$0xff]
    %v536 = vld [vmem:[#allocation8 + $0x78] sm:$0xff]
    %v537 = vld [vmem:[#allocation8 + $0x80] sm:$0xff]
    %v538 = vld [vmem:[#allocation8 + $0x88] sm:$0xff]
    %v539 = vld [vmem:[#allocation8 + $0x90] sm:$0xff]
    %v540 = vld [vmem:[#allocation8 + $0x98] sm:$0xff]
    %v541 = vld [vmem:[#allocation8 + $0xa0] sm:$0xff]
    %v542 = vld [vmem:[#allocation8 + $0xa8] sm:$0xff]
    %v543 = vld [vmem:[#allocation8 + $0xb0] sm:$0xff]
    %v544 = vld [vmem:[#allocation8 + $0xb8] sm:$0xff]
    %v545 = vld [vmem:[#allocation8 + $0xc0] sm:$0xff]
    %v546 = vld [vmem:[#allocation8 + $0xc8] sm:$0xff]
    %v547 = vld [vmem:[#allocation8 + $0xd0] sm:$0xff]
    %v548 = vld [vmem:[#allocation8 + $0xd8] sm:$0xff]
    %v549 = vld [vmem:[#allocation8 + $0xe0] sm:$0xff]
    %v550 = vld [vmem:[#allocation8 + $0xe8] sm:$0xff]
    %v551 = vld [vmem:[#allocation8 + $0xf0] sm:$0xff]
    %v552 = vld [vmem:[#allocation8 + $0xf8] sm:$0xff]
    %v553 = vld [vmem:[#allocation8 + $0x100] sm:$0xff]
    %v554 = vld [vmem:[#allocation8 + $0x108] sm:$0xff]
    %v555 = vld [vmem:[#allocation8 + $0x110] sm:$0xff]
    %v556 = vld [vmem:[#allocation8 + $0x118] sm:$0xff]
    %v557 = vld [vmem:[#allocation8 + $0x120] sm:$0xff]
    %v558 = vld [vmem:[#allocation8 + $0x128] sm:$0xff]
    %v559 = vld [vmem:[#allocation8 + $0x130] sm:$0xff]
    %v560 = vld [vmem:[#allocation8 + $0x138] sm:$0xff]
    %v561 = vld [vmem:[#allocation8 + $0x140] sm:$0xff]
    %v562 = vld [vmem:[#allocation8 + $0x148] sm:$0xff]
    %v563 = vld [vmem:[#allocation8 + $0x150] sm:$0xff]
    %v564 = vld [vmem:[#allocation8 + $0x158] sm:$0xff]
    %v565 = vld [vmem:[#allocation8 + $0x160] sm:$0xff]
    %v566 = vld [vmem:[#allocation8 + $0x168] sm:$0xff]
    %v567 = vld [vmem:[#allocation8 + $0x170] sm:$0xff]
    %v568 = vld [vmem:[#allocation8 + $0x178] sm:$0xff]
    %569 = vmatprep.subr.mxu0 %v567
    %570 = vmatpush1.msra.mxu0 %v566
    %571 = vmatprep.subr.mxu0 %v564
    %572 = vmatpush1.msra.mxu0 %v563
    %573 = vmatprep.subr.mxu0 %v561
    %574 = vmatpush1.msra.mxu0 %v560
    %575 = vmatprep.subr.mxu0 %v558
    %576 = vmatpush1.msra.mxu0 %v557
    %577 = vmatprep.subr.mxu0 %v555
    %578 = vmatpush1.msra.mxu0 %v554
    %579 = vmatprep.subr.mxu0 %v552
    %580 = vmatpush1.msra.mxu0 %v551
    %581 = vmatprep.subr.mxu0 %v549
    %582 = vmatpush1.msra.mxu0 %v548
    %583 = vmatprep.subr.mxu0 %v546
    %584 = vmatpush1.msra.mxu0 %v545
    %585 = vmatprep.subr.mxu0 %v543
    %586 = vmatpush1.msra.mxu0 %v542
    %587 = vmatprep.subr.mxu0 %v540
    %588 = vmatpush1.msra.mxu0 %v539
    %589 = vmatprep.subr.mxu0 %v537
    %590 = vmatpush1.msra.mxu0 %v536
    %591 = vmatprep.subr.mxu0 %v534
    %592 = vmatpush1.msra.mxu0 %v533
    %593 = vmatprep.subr.mxu0 %v531
    %594 = vmatpush1.msra.mxu0 %v530
    %595 = vmatprep.subr.mxu0 %v528
    %596 = vmatpush1.msra.mxu0 %v527
    %597 = vmatprep.subr.mxu0 %v525
    %598 = vmatpush1.msra.mxu0 %v524
    %599 = vmatprep.subr.mxu0 %v522
    %600 = vmatpush1.msra.mxu0 %v521
    %601 = vmatprep.subr.mxu0 0.0
    %602 = vmatpush2.msra.mxu0 0.0
    %603 = vmatprep.subr.mxu0 0.0
    %604 = vmatpush2.msra.mxu0 0.0
    %605 = vmatprep.subr.mxu0 0.0
    %606 = vmatpush2.msra.mxu0 0.0
    %607 = vmatprep.subr.mxu0 0.0
    %608 = vmatpush2.msra.mxu0 0.0
    %609 = vmatprep.subr.mxu0 0.0
    %610 = vmatpush2.msra.mxu0 0.0
    %611 = vmatprep.subr.mxu0 0.0
    %612 = vmatpush2.msra.mxu0 0.0
    %613 = vmatprep.subr.mxu0 0.0
    %614 = vmatpush2.msra.mxu0 0.0
    %615 = vmatprep.subr.mxu0 0.0
    %616 = vmatpush2.msra.mxu0 0.0
    %617 = vmatprep.subr.mxu0 0.0
    %618 = vmatpush2.msra.mxu0 0.0
    %619 = vmatprep.subr.mxu0 0.0
    %620 = vmatpush2.msra.mxu0 0.0
    %621 = vmatprep.subr.mxu0 0.0
    %622 = vmatpush2.msra.mxu0 0.0
    %623 = vmatprep.subr.mxu0 0.0
    %624 = vmatpush2.msra.mxu0 0.0
    %625 = vmatprep.subr.mxu0 0.0
    %626 = vmatpush2.msra.mxu0 0.0
    %627 = vmatprep.subr.mxu0 0.0
    %628 = vmatpush2.msra.mxu0 0.0
    %629 = vmatprep.subr.mxu0 0.0
    %630 = vmatpush2.msra.mxu0 0.0
    %631 = vmatprep.subr.mxu0 0.0
    %632 = vmatpush2.msra.mxu0 0.0
    %633 = vmatprep.mubr.f32.mxu0 0.0
    %634 = vmatmul.mubr.f32.gmra.mxu0 %v505
    %v635 = vpop.f32.mrf.mxu0
    %v636 = vadd.f32 0.0, %v635
    %v637 = vpop.f32.mrf.mxu0
    %v638 = vadd.f32 0.0, %v637
    %639 = vmatprep.mubr.f32.mxu0 0.0
    %640 = vmatmul.mubr.f32.gmra.mxu0 %v506
    %v641 = vpop.f32.mrf.mxu0
    %v642 = vadd.f32 0.0, %v641
    %v643 = vpop.f32.mrf.mxu0
    %v644 = vadd.f32 0.0, %v643
    %645 = vmatprep.mubr.f32.mxu0 0.0
    %646 = vmatmul.mubr.f32.gmra.mxu0 %v507
    %v647 = vpop.f32.mrf.mxu0
    %v648 = vadd.f32 0.0, %v647
    %v649 = vpop.f32.mrf.mxu0
    %v650 = vadd.f32 0.0, %v649
    %651 = vmatprep.mubr.f32.mxu0 0.0
    %652 = vmatmul.mubr.f32.gmra.mxu0 %v508
    %v653 = vpop.f32.mrf.mxu0
    %v654 = vadd.f32 0.0, %v653
    %v655 = vpop.f32.mrf.mxu0
    %v656 = vadd.f32 0.0, %v655
    %657 = vmatprep.mubr.f32.mxu0 0.0
    %658 = vmatmul.mubr.f32.gmra.mxu0 %v509
    %v659 = vpop.f32.mrf.mxu0
    %v660 = vadd.f32 0.0, %v659
    %v661 = vpop.f32.mrf.mxu0
    %v662 = vadd.f32 0.0, %v661
    %663 = vmatprep.mubr.f32.mxu0 0.0
    %664 = vmatmul.mubr.f32.gmra.mxu0 %v510
    %v665 = vpop.f32.mrf.mxu0
    %v666 = vadd.f32 0.0, %v665
    %v667 = vpop.f32.mrf.mxu0
    %v668 = vadd.f32 0.0, %v667
    %669 = vmatprep.mubr.f32.mxu0 0.0
    %670 = vmatmul.mubr.f32.gmra.mxu0 %v511
    %v671 = vpop.f32.mrf.mxu0
    %v672 = vadd.f32 0.0, %v671
    %v673 = vpop.f32.mrf.mxu0
    %v674 = vadd.f32 0.0, %v673
    %675 = vmatprep.mubr.f32.mxu0 0.0
    %676 = vmatmul.mubr.f32.gmra.mxu0 %v512
    %v677 = vpop.f32.mrf.mxu0
    %v678 = vadd.f32 0.0, %v677
    %v679 = vpop.f32.mrf.mxu0
    %v680 = vadd.f32 0.0, %v679
    %681 = vmatprep.mubr.f32.mxu0 0.0
    %682 = vmatmul.mubr.f32.gmra.mxu0 %v513
    %v683 = vpop.f32.mrf.mxu0
    %v684 = vadd.f32 0.0, %v683
    %v685 = vpop.f32.mrf.mxu0
    %v686 = vadd.f32 0.0, %v685
    %687 = vmatprep.mubr.f32.mxu0 0.0
    %688 = vmatmul.mubr.f32.gmra.mxu0 %v514
    %v689 = vpop.f32.mrf.mxu0
    %v690 = vadd.f32 0.0, %v689
    %v691 = vpop.f32.mrf.mxu0
    %v692 = vadd.f32 0.0, %v691
    %693 = vmatprep.mubr.f32.mxu0 0.0
    %694 = vmatmul.mubr.f32.gmra.mxu0 %v515
    %v695 = vpop.f32.mrf.mxu0
    %v696 = vadd.f32 0.0, %v695
    %v697 = vpop.f32.mrf.mxu0
    %v698 = vadd.f32 0.0, %v697
    %699 = vmatprep.mubr.f32.mxu0 0.0
    %700 = vmatmul.mubr.f32.gmra.mxu0 %v516
    %v701 = vpop.f32.mrf.mxu0
    %v702 = vadd.f32 0.0, %v701
    %v703 = vpop.f32.mrf.mxu0
    %v704 = vadd.f32 0.0, %v703
    %705 = vmatprep.mubr.f32.mxu0 0.0
    %706 = vmatmul.mubr.f32.gmra.mxu0 %v517
    %v707 = vpop.f32.mrf.mxu0
    %v708 = vadd.f32 0.0, %v707
    %v709 = vpop.f32.mrf.mxu0
    %v710 = vadd.f32 0.0, %v709
    %711 = vmatprep.mubr.f32.mxu0 0.0
    %712 = vmatmul.mubr.f32.gmra.mxu0 %v518
    %v713 = vpop.f32.mrf.mxu0
    %v714 = vadd.f32 0.0, %v713
    %v715 = vpop.f32.mrf.mxu0
    %v716 = vadd.f32 0.0, %v715
    %717 = vmatprep.mubr.f32.mxu0 0.0
    %718 = vmatmul.mubr.f32.gmra.mxu0 %v519
    %v719 = vpop.f32.mrf.mxu0
    %v720 = vadd.f32 0.0, %v719
    %v721 = vpop.f32.mrf.mxu0
    %v722 = vadd.f32 0.0, %v721
    %723 = vmatprep.mubr.f32.mxu0 0.0
    %724 = vmatmul.mubr.f32.gmra.mxu0 %v520
    %v725 = vpop.f32.mrf.mxu0
    %v726 = vadd.f32 0.0, %v725
    %v727 = vpop.f32.mrf.mxu0
    %v728 = vadd.f32 0.0, %v727
    %729 = vdwg.mxu0
    %730 = vmatprep.subr.mxu0 0.0
    %731 = vmatpush1.msra.mxu0 %v568
    %732 = vmatprep.subr.mxu0 0.0
    %733 = vmatpush1.msra.mxu0 %v565
    %734 = vmatprep.subr.mxu0 0.0
    %735 = vmatpush1.msra.mxu0 %v562
    %736 = vmatprep.subr.mxu0 0.0
    %737 = vmatpush1.msra.mxu0 %v559
    %738 = vmatprep.subr.mxu0 0.0
    %739 = vmatpush1.msra.mxu0 %v556
    %740 = vmatprep.subr.mxu0 0.0
    %741 = vmatpush1.msra.mxu0 %v553
    %742 = vmatprep.subr.mxu0 0.0
    %743 = vmatpush1.msra.mxu0 %v550
    %744 = vmatprep.subr.mxu0 0.0
    %745 = vmatpush1.msra.mxu0 %v547
    %746 = vmatprep.subr.mxu0 0.0
    %747 = vmatpush1.msra.mxu0 %v544
    %748 = vmatprep.subr.mxu0 0.0
    %749 = vmatpush1.msra.mxu0 %v541
    %750 = vmatprep.subr.mxu0 0.0
    %751 = vmatpush1.msra.mxu0 %v538
    %752 = vmatprep.subr.mxu0 0.0
    %753 = vmatpush1.msra.mxu0 %v535
    %754 = vmatprep.subr.mxu0 0.0
    %755 = vmatpush1.msra.mxu0 %v532
    %756 = vmatprep.subr.mxu0 0.0
    %757 = vmatpush1.msra.mxu0 %v529
    %758 = vmatprep.subr.mxu0 0.0
    %759 = vmatpush1.msra.mxu0 %v526
    %760 = vmatprep.subr.mxu0 0.0
    %761 = vmatpush1.msra.mxu0 %v523
    %762 = vmatprep.subr.mxu0 0.0
    %763 = vmatpush2.msra.mxu0 0.0
    %764 = vmatprep.subr.mxu0 0.0
    %765 = vmatpush2.msra.mxu0 0.0
    %766 = vmatprep.subr.mxu0 0.0
    %767 = vmatpush2.msra.mxu0 0.0
    %768 = vmatprep.subr.mxu0 0.0
    %769 = vmatpush2.msra.mxu0 0.0
    %770 = vmatprep.subr.mxu0 0.0
    %771 = vmatpush2.msra.mxu0 0.0
    %772 = vmatprep.subr.mxu0 0.0
    %773 = vmatpush2.msra.mxu0 0.0
    %774 = vmatprep.subr.mxu0 0.0
    %775 = vmatpush2.msra.mxu0 0.0
    %776 = vmatprep.subr.mxu0 0.0
    %777 = vmatpush2.msra.mxu0 0.0
    %778 = vmatprep.subr.mxu0 0.0
    %779 = vmatpush2.msra.mxu0 0.0
    %780 = vmatprep.subr.mxu0 0.0
    %781 = vmatpush2.msra.mxu0 0.0
    %782 = vmatprep.subr.mxu0 0.0
    %783 = vmatpush2.msra.mxu0 0.0
    %784 = vmatprep.subr.mxu0 0.0
    %785 = vmatpush2.msra.mxu0 0.0
    %786 = vmatprep.subr.mxu0 0.0
    %787 = vmatpush2.msra.mxu0 0.0
    %788 = vmatprep.subr.mxu0 0.0
    %789 = vmatpush2.msra.mxu0 0.0
    %790 = vmatprep.subr.mxu0 0.0
    %791 = vmatpush2.msra.mxu0 0.0
    %792 = vmatprep.subr.mxu0 0.0
    %793 = vmatpush2.msra.mxu0 0.0
    %794 = vmatprep.mubr.f32.mxu0 0.0
    %795 = vmatmul.mubr.f32.gmra.mxu0 %v505
    %v796 = vpop.f32.mrf.mxu0
    %v797 = vadd.f32 0.0, %v796
    %v798 = vpop.f32.mrf.mxu0
    %799 = vmatprep.mubr.f32.mxu0 0.0
    %800 = vmatmul.mubr.f32.gmra.mxu0 %v506
    %v801 = vpop.f32.mrf.mxu0
    %v802 = vadd.f32 0.0, %v801
    %v803 = vpop.f32.mrf.mxu0
    %804 = vmatprep.mubr.f32.mxu0 0.0
    %805 = vmatmul.mubr.f32.gmra.mxu0 %v507
    %v806 = vpop.f32.mrf.mxu0
    %v807 = vadd.f32 0.0, %v806
    %v808 = vpop.f32.mrf.mxu0
    %809 = vmatprep.mubr.f32.mxu0 0.0
    %810 = vmatmul.mubr.f32.gmra.mxu0 %v508
    %v811 = vpop.f32.mrf.mxu0
    %v812 = vadd.f32 0.0, %v811
    %v813 = vpop.f32.mrf.mxu0
    %814 = vmatprep.mubr.f32.mxu0 0.0
    %815 = vmatmul.mubr.f32.gmra.mxu0 %v509
    %v816 = vpop.f32.mrf.mxu0
    %v817 = vadd.f32 0.0, %v816
    %v818 = vpop.f32.mrf.mxu0
    %819 = vmatprep.mubr.f32.mxu0 0.0
    %820 = vmatmul.mubr.f32.gmra.mxu0 %v510
    %v821 = vpop.f32.mrf.mxu0
    %v822 = vadd.f32 0.0, %v821
    %v823 = vpop.f32.mrf.mxu0
    %824 = vmatprep.mubr.f32.mxu0 0.0
    %825 = vmatmul.mubr.f32.gmra.mxu0 %v511
    %v826 = vpop.f32.mrf.mxu0
    %v827 = vadd.f32 0.0, %v826
    %v828 = vpop.f32.mrf.mxu0
    %829 = vmatprep.mubr.f32.mxu0 0.0
    %830 = vmatmul.mubr.f32.gmra.mxu0 %v512
    %v831 = vpop.f32.mrf.mxu0
    %v832 = vadd.f32 0.0, %v831
    %v833 = vpop.f32.mrf.mxu0
    %834 = vmatprep.mubr.f32.mxu0 0.0
    %835 = vmatmul.mubr.f32.gmra.mxu0 %v513
    %v836 = vpop.f32.mrf.mxu0
    %v837 = vadd.f32 0.0, %v836
    %v838 = vpop.f32.mrf.mxu0
    %839 = vmatprep.mubr.f32.mxu0 0.0
    %840 = vmatmul.mubr.f32.gmra.mxu0 %v514
    %v841 = vpop.f32.mrf.mxu0
    %v842 = vadd.f32 0.0, %v841
    %v843 = vpop.f32.mrf.mxu0
    %844 = vmatprep.mubr.f32.mxu0 0.0
    %845 = vmatmul.mubr.f32.gmra.mxu0 %v515
    %v846 = vpop.f32.mrf.mxu0
    %v847 = vadd.f32 0.0, %v846
    %v848 = vpop.f32.mrf.mxu0
    %849 = vmatprep.mubr.f32.mxu0 0.0
    %850 = vmatmul.mubr.f32.gmra.mxu0 %v516
    %v851 = vpop.f32.mrf.mxu0
    %v852 = vadd.f32 0.0, %v851
    %v853 = vpop.f32.mrf.mxu0
    %854 = vmatprep.mubr.f32.mxu0 0.0
    %855 = vmatmul.mubr.f32.gmra.mxu0 %v517
    %v856 = vpop.f32.mrf.mxu0
    %v857 = vadd.f32 0.0, %v856
    %v858 = vpop.f32.mrf.mxu0
    %859 = vmatprep.mubr.f32.mxu0 0.0
    %860 = vmatmul.mubr.f32.gmra.mxu0 %v518
    %v861 = vpop.f32.mrf.mxu0
    %v862 = vadd.f32 0.0, %v861
    %v863 = vpop.f32.mrf.mxu0
    %864 = vmatprep.mubr.f32.mxu0 0.0
    %865 = vmatmul.mubr.f32.gmra.mxu0 %v519
    %v866 = vpop.f32.mrf.mxu0
    %v867 = vadd.f32 0.0, %v866
    %v868 = vpop.f32.mrf.mxu0
    %869 = vmatprep.mubr.f32.mxu0 0.0
    %870 = vmatmul.mubr.f32.gmra.mxu0 %v520
    %v871 = vpop.f32.mrf.mxu0
    %v872 = vadd.f32 0.0, %v871
    %v873 = vpop.f32.mrf.mxu0
    %874 = vdwg.mxu0
    %v875 = vrot.slane %v636, 7
    %v876 = vrot.slane %v642, 7
    %v877 = vrot.slane %v648, 7
    %v878 = vrot.slane %v654, 7
    %v879 = vrot.slane %v660, 7
    %v880 = vrot.slane %v666, 7
    %v881 = vrot.slane %v672, 7
    %v882 = vrot.slane %v678, 7
    %v883 = vrot.slane %v684, 7
    %v884 = vrot.slane %v690, 7
    %v885 = vrot.slane %v696, 7
    %v886 = vrot.slane %v702, 7
    %v887 = vrot.slane %v708, 7
    %v888 = vrot.slane %v714, 7
    %v889 = vrot.slane %v720, 7
    %v890 = vrot.slane %v726, 7
    %v891 = vlaneseq
    %v892 = vshrl.u32 %v891, 7
    %vm893 = vcmp.lt.s32.totalorder %v892, 1
    %v894 = vsel %vm893, %v889, %v890
    %v895 = vsel %vm893, %v888, %v889
    %v896 = vsel %vm893, %v887, %v888
    %v897 = vsel %vm893, %v886, %v887
    %v898 = vsel %vm893, %v885, %v886
    %v899 = vsel %vm893, %v884, %v885
    %v900 = vsel %vm893, %v883, %v884
    %v901 = vsel %vm893, %v882, %v883
    %v902 = vsel %vm893, %v881, %v882
    %v903 = vsel %vm893, %v880, %v881
    %v904 = vsel %vm893, %v879, %v880
    %v905 = vsel %vm893, %v878, %v879
    %v906 = vsel %vm893, %v877, %v878
    %v907 = vsel %vm893, %v876, %v877
    %v908 = vsel %vm893, %v875, %v876
    %v909 = vsel %vm893, %v890, %v875
    %v910 = vld [vmem:[#allocation13] sm:$0xff]
    %v911 = vld [vmem:[#allocation13 + $0x20] sm:$0xff]
    %v912 = vld [vmem:[#allocation13 + $0x40] sm:$0xff]
    %v913 = vld [vmem:[#allocation13 + $0x60] sm:$0xff]
    %v914 = vld [vmem:[#allocation13 + $0x80] sm:$0xff]
    %v915 = vld [vmem:[#allocation13 + $0xa0] sm:$0xff]
    %v916 = vld [vmem:[#allocation13 + $0xc0] sm:$0xff]
    %v917 = vld [vmem:[#allocation13 + $0xe0] sm:$0xff]
    %v918 = vld [vmem:[#allocation13 + $0x100] sm:$0xff]
    %v919 = vld [vmem:[#allocation13 + $0x120] sm:$0xff]
    %v920 = vld [vmem:[#allocation13 + $0x140] sm:$0xff]
    %v921 = vld [vmem:[#allocation13 + $0x160] sm:$0xff]
    %v922 = vld [vmem:[#allocation13 + $0x180] sm:$0xff]
    %v923 = vld [vmem:[#allocation13 + $0x1a0] sm:$0xff]
    %v924 = vld [vmem:[#allocation13 + $0x1c0] sm:$0xff]
    %v925 = vld [vmem:[#allocation13 + $0x1e0] sm:$0xff]
    %v926 = vmul.f32 %v909, %v910
    %v927 = vmul.f32 %v908, %v911
    %v928 = vmul.f32 %v907, %v912
    %v929 = vmul.f32 %v906, %v913
    %v930 = vmul.f32 %v905, %v914
    %v931 = vmul.f32 %v904, %v915
    %v932 = vmul.f32 %v903, %v916
    %v933 = vmul.f32 %v902, %v917
    %v934 = vmul.f32 %v901, %v918
    %v935 = vmul.f32 %v900, %v919
    %v936 = vmul.f32 %v899, %v920
    %v937 = vmul.f32 %v898, %v921
    %v938 = vmul.f32 %v897, %v922
    %v939 = vmul.f32 %v896, %v923
    %v940 = vmul.f32 %v895, %v924
    %v941 = vmul.f32 %v894, %v925
    %v942 = vrot.slane %v797, 1
    %v943 = vrot.slane %v802, 1
    %v944 = vrot.slane %v807, 1
    %v945 = vrot.slane %v812, 1
    %v946 = vrot.slane %v817, 1
    %v947 = vrot.slane %v822, 1
    %v948 = vrot.slane %v827, 1
    %v949 = vrot.slane %v832, 1
    %v950 = vrot.slane %v837, 1
    %v951 = vrot.slane %v842, 1
    %v952 = vrot.slane %v847, 1
    %v953 = vrot.slane %v852, 1
    %v954 = vrot.slane %v857, 1
    %v955 = vrot.slane %v862, 1
    %v956 = vrot.slane %v867, 1
    %v957 = vrot.slane %v872, 1
    %vm958 = vcmp.lt.s32.totalorder %v892, 7
    %v959 = vsel %vm958, %v956, %v957
    %v960 = vsel %vm958, %v955, %v956
    %v961 = vsel %vm958, %v954, %v955
    %v962 = vsel %vm958, %v953, %v954
    %v963 = vsel %vm958, %v952, %v953
    %v964 = vsel %vm958, %v951, %v952
    %v965 = vsel %vm958, %v950, %v951
    %v966 = vsel %vm958, %v949, %v950
    %v967 = vsel %vm958, %v948, %v949
    %v968 = vsel %vm958, %v947, %v948
    %v969 = vsel %vm958, %v946, %v947
    %v970 = vsel %vm958, %v945, %v946
    %v971 = vsel %vm958, %v944, %v945
    %v972 = vsel %vm958, %v943, %v944
    %v973 = vsel %vm958, %v942, %v943
    %v974 = vsel %vm958, %v957, %v942
    %v975 = vld [vmem:[#allocation13 + $0x8] sm:$0xff]
    %v976 = vld [vmem:[#allocation13 + $0x28] sm:$0xff]
    %v977 = vld [vmem:[#allocation13 + $0x48] sm:$0xff]
    %v978 = vld [vmem:[#allocation13 + $0x68] sm:$0xff]
    %v979 = vld [vmem:[#allocation13 + $0x88] sm:$0xff]
    %v980 = vld [vmem:[#allocation13 + $0xa8] sm:$0xff]
    %v981 = vld [vmem:[#allocation13 + $0xc8] sm:$0xff]
    %v982 = vld [vmem:[#allocation13 + $0xe8] sm:$0xff]
    %v983 = vld [vmem:[#allocation13 + $0x108] sm:$0xff]
    %v984 = vld [vmem:[#allocation13 + $0x128] sm:$0xff]
    %v985 = vld [vmem:[#allocation13 + $0x148] sm:$0xff]
    %v986 = vld [vmem:[#allocation13 + $0x168] sm:$0xff]
    %v987 = vld [vmem:[#allocation13 + $0x188] sm:$0xff]
    %v988 = vld [vmem:[#allocation13 + $0x1a8] sm:$0xff]
    %v989 = vld [vmem:[#allocation13 + $0x1c8] sm:$0xff]
    %v990 = vld [vmem:[#allocation13 + $0x1e8] sm:$0xff]
    %v991 = vmul.f32 %v973, %v975
    %v992 = vmul.f32 %v972, %v976
    %v993 = vmul.f32 %v971, %v977
    %v994 = vmul.f32 %v970, %v978
    %v995 = vmul.f32 %v969, %v979
    %v996 = vmul.f32 %v968, %v980
    %v997 = vmul.f32 %v967, %v981
    %v998 = vmul.f32 %v966, %v982
    %v999 = vmul.f32 %v965, %v983
    %v1000 = vmul.f32 %v964, %v984
    %v1001 = vmul.f32 %v963, %v985
    %v1002 = vmul.f32 %v962, %v986
    %v1003 = vmul.f32 %v961, %v987
    %v1004 = vmul.f32 %v960, %v988
    %v1005 = vmul.f32 %v959, %v989
    %v1006 = vmul.f32 %v974, %v990
    %v1007 = vadd.f32 %v926, %v638
    %v1008 = vadd.f32 %v927, %v644
    %v1009 = vadd.f32 %v928, %v650
    %v1010 = vadd.f32 %v929, %v656
    %v1011 = vadd.f32 %v930, %v662
    %v1012 = vadd.f32 %v931, %v668
    %v1013 = vadd.f32 %v932, %v674
    %v1014 = vadd.f32 %v933, %v680
    %v1015 = vadd.f32 %v934, %v686
    %v1016 = vadd.f32 %v935, %v692
    %v1017 = vadd.f32 %v936, %v698
    %v1018 = vadd.f32 %v937, %v704
    %v1019 = vadd.f32 %v938, %v710
    %v1020 = vadd.f32 %v939, %v716
    %v1021 = vadd.f32 %v940, %v722
    %v1022 = vadd.f32 %v941, %v728
    %v1023 = vadd.f32 %v1007, %v991
    %v1024 = vadd.f32 %v1008, %v992
    %v1025 = vadd.f32 %v1009, %v993
    %v1026 = vadd.f32 %v1010, %v994
    %v1027 = vadd.f32 %v1011, %v995
    %v1028 = vadd.f32 %v1012, %v996
    %v1029 = vadd.f32 %v1013, %v997
    %v1030 = vadd.f32 %v1014, %v998
    %v1031 = vadd.f32 %v1015, %v999
    %v1032 = vadd.f32 %v1016, %v1000
    %v1033 = vadd.f32 %v1017, %v1001
    %v1034 = vadd.f32 %v1018, %v1002
    %v1035 = vadd.f32 %v1019, %v1003
    %v1036 = vadd.f32 %v1020, %v1004
    %v1037 = vadd.f32 %v1021, %v1005
    %v1038 = vadd.f32 %v1022, %v1006
    %v1039 = vld [vmem:[%s6] sm:$0x1]
    %v1041 = vlaneseq
    %v1042 = vshrl.u32 %v1041, 7
    %v1043 = vsub.s32 0, %v1042
    %v1044 = vrot.slane %v1039, %v1043
    %v1046 = vadd.f32 %v1023, %v1044
    %v1047 = vadd.f32 %v1024, %v1044
    %v1048 = vadd.f32 %v1025, %v1044
    %v1049 = vadd.f32 %v1026, %v1044
    %v1050 = vadd.f32 %v1027, %v1044
    %v1051 = vadd.f32 %v1028, %v1044
    %v1052 = vadd.f32 %v1029, %v1044
    %v1053 = vadd.f32 %v1030, %v1044
    %v1054 = vadd.f32 %v1031, %v1044
    %v1055 = vadd.f32 %v1032, %v1044
    %v1056 = vadd.f32 %v1033, %v1044
    %v1057 = vadd.f32 %v1034, %v1044
    %v1058 = vadd.f32 %v1035, %v1044
    %v1059 = vadd.f32 %v1036, %v1044
    %v1060 = vadd.f32 %v1037, %v1044
    %v1061 = vadd.f32 %v1038, %v1044
    %v1062 = vadd.f32 %v1046, %v427
    %v1063 = vadd.f32 %v1047, %v432
    %v1064 = vadd.f32 %v1048, %v437
    %v1065 = vadd.f32 %v1049, %v442
    %v1066 = vadd.f32 %v1050, %v447
    %v1067 = vadd.f32 %v1051, %v452
    %v1068 = vadd.f32 %v1052, %v457
    %v1069 = vadd.f32 %v1053, %v462
    %v1070 = vadd.f32 %v1054, %v467
    %v1071 = vadd.f32 %v1055, %v472
    %v1072 = vadd.f32 %v1056, %v477
    %v1073 = vadd.f32 %v1057, %v482
    %v1074 = vadd.f32 %v1058, %v487
    %v1075 = vadd.f32 %v1059, %v492
    %v1076 = vadd.f32 %v1060, %v497
    %v1077 = vadd.f32 %v1061, %v502
    %v1078 = vadd.f32 %v427, %v1062
    %v1079 = vadd.f32 %v432, %v1063
    %v1080 = vadd.f32 %v437, %v1064
    %v1081 = vadd.f32 %v442, %v1065
    %v1082 = vadd.f32 %v447, %v1066
    %v1083 = vadd.f32 %v452, %v1067
    %v1084 = vadd.f32 %v457, %v1068
    %v1085 = vadd.f32 %v462, %v1069
    %v1086 = vadd.f32 %v467, %v1070
    %v1087 = vadd.f32 %v472, %v1071
    %v1088 = vadd.f32 %v477, %v1072
    %v1089 = vadd.f32 %v482, %v1073
    %v1090 = vadd.f32 %v487, %v1074
    %v1091 = vadd.f32 %v492, %v1075
    %v1092 = vadd.f32 %v497, %v1076
    %v1093 = vadd.f32 %v502, %v1077
    %v1094 = vmax.f32 %v1062, 0.0
    %v1095 = vmax.f32 %v1063, 0.0
    %v1096 = vmax.f32 %v1064, 0.0
    %v1097 = vmax.f32 %v1065, 0.0
    %v1098 = vmax.f32 %v1066, 0.0
    %v1099 = vmax.f32 %v1067, 0.0
    %v1100 = vmax.f32 %v1068, 0.0
    %v1101 = vmax.f32 %v1069, 0.0
    %v1102 = vmax.f32 %v1070, 0.0
    %v1103 = vmax.f32 %v1071, 0.0
    %v1104 = vmax.f32 %v1072, 0.0
    %v1105 = vmax.f32 %v1073, 0.0
    %v1106 = vmax.f32 %v1074, 0.0
    %v1107 = vmax.f32 %v1075, 0.0
    %v1108 = vmax.f32 %v1076, 0.0
    %v1109 = vmax.f32 %v1077, 0.0
    %v1110 = vld [vmem:[#allocation10] sm:$0xff]
    %v1111 = vld [vmem:[#allocation10 + $0x8] sm:$0xff]
    %v1112 = vld [vmem:[#allocation10 + $0x10] sm:$0xff]
    %v1113 = vld [vmem:[#allocation10 + $0x18] sm:$0xff]
    %v1114 = vld [vmem:[#allocation10 + $0x20] sm:$0xff]
    %v1115 = vld [vmem:[#allocation10 + $0x28] sm:$0xff]
    %v1116 = vld [vmem:[#allocation10 + $0x30] sm:$0xff]
    %v1117 = vld [vmem:[#allocation10 + $0x38] sm:$0xff]
    %v1118 = vld [vmem:[#allocation10 + $0x40] sm:$0xff]
    %v1119 = vld [vmem:[#allocation10 + $0x48] sm:$0xff]
    %v1120 = vld [vmem:[#allocation10 + $0x50] sm:$0xff]
    %v1121 = vld [vmem:[#allocation10 + $0x58] sm:$0xff]
    %v1122 = vld [vmem:[#allocation10 + $0x60] sm:$0xff]
    %v1123 = vld [vmem:[#allocation10 + $0x68] sm:$0xff]
    %v1124 = vld [vmem:[#allocation10 + $0x70] sm:$0xff]
    %v1125 = vld [vmem:[#allocation10 + $0x78] sm:$0xff]
    %v1126 = vld [vmem:[#allocation10 + $0x80] sm:$0xff]
    %v1127 = vld [vmem:[#allocation10 + $0x88] sm:$0xff]
    %v1128 = vld [vmem:[#allocation10 + $0x90] sm:$0xff]
    %v1129 = vld [vmem:[#allocation10 + $0x98] sm:$0xff]
    %v1130 = vld [vmem:[#allocation10 + $0xa0] sm:$0xff]
    %v1131 = vld [vmem:[#allocation10 + $0xa8] sm:$0xff]
    %v1132 = vld [vmem:[#allocation10 + $0xb0] sm:$0xff]
    %v1133 = vld [vmem:[#allocation10 + $0xb8] sm:$0xff]
    %v1134 = vld [vmem:[#allocation10 + $0xc0] sm:$0xff]
    %v1135 = vld [vmem:[#allocation10 + $0xc8] sm:$0xff]
    %v1136 = vld [vmem:[#allocation10 + $0xd0] sm:$0xff]
    %v1137 = vld [vmem:[#allocation10 + $0xd8] sm:$0xff]
    %v1138 = vld [vmem:[#allocation10 + $0xe0] sm:$0xff]
    %v1139 = vld [vmem:[#allocation10 + $0xe8] sm:$0xff]
    %v1140 = vld [vmem:[#allocation10 + $0xf0] sm:$0xff]
    %v1141 = vld [vmem:[#allocation10 + $0xf8] sm:$0xff]
    %v1142 = vld [vmem:[#allocation10 + $0x100] sm:$0xff]
    %v1143 = vld [vmem:[#allocation10 + $0x108] sm:$0xff]
    %v1144 = vld [vmem:[#allocation10 + $0x110] sm:$0xff]
    %v1145 = vld [vmem:[#allocation10 + $0x118] sm:$0xff]
    %v1146 = vld [vmem:[#allocation10 + $0x120] sm:$0xff]
    %v1147 = vld [vmem:[#allocation10 + $0x128] sm:$0xff]
    %v1148 = vld [vmem:[#allocation10 + $0x130] sm:$0xff]
    %v1149 = vld [vmem:[#allocation10 + $0x138] sm:$0xff]
    %v1150 = vld [vmem:[#allocation10 + $0x140] sm:$0xff]
    %v1151 = vld [vmem:[#allocation10 + $0x148] sm:$0xff]
    %v1152 = vld [vmem:[#allocation10 + $0x150] sm:$0xff]
    %v1153 = vld [vmem:[#allocation10 + $0x158] sm:$0xff]
    %v1154 = vld [vmem:[#allocation10 + $0x160] sm:$0xff]
    %v1155 = vld [vmem:[#allocation10 + $0x168] sm:$0xff]
    %v1156 = vld [vmem:[#allocation10 + $0x170] sm:$0xff]
    %v1157 = vld [vmem:[#allocation10 + $0x178] sm:$0xff]
    %1158 = vmatprep.subr.mxu0 %v1156
    %1159 = vmatpush1.msra.mxu0 %v1155
    %1160 = vmatprep.subr.mxu0 %v1153
    %1161 = vmatpush1.msra.mxu0 %v1152
    %1162 = vmatprep.subr.mxu0 %v1150
    %1163 = vmatpush1.msra.mxu0 %v1149
    %1164 = vmatprep.subr.mxu0 %v1147
    %1165 = vmatpush1.msra.mxu0 %v1146
    %1166 = vmatprep.subr.mxu0 %v1144
    %1167 = vmatpush1.msra.mxu0 %v1143
    %1168 = vmatprep.subr.mxu0 %v1141
    %1169 = vmatpush1.msra.mxu0 %v1140
    %1170 = vmatprep.subr.mxu0 %v1138
    %1171 = vmatpush1.msra.mxu0 %v1137
    %1172 = vmatprep.subr.mxu0 %v1135
    %1173 = vmatpush1.msra.mxu0 %v1134
    %1174 = vmatprep.subr.mxu0 %v1132
    %1175 = vmatpush1.msra.mxu0 %v1131
    %1176 = vmatprep.subr.mxu0 %v1129
    %1177 = vmatpush1.msra.mxu0 %v1128
    %1178 = vmatprep.subr.mxu0 %v1126
    %1179 = vmatpush1.msra.mxu0 %v1125
    %1180 = vmatprep.subr.mxu0 %v1123
    %1181 = vmatpush1.msra.mxu0 %v1122
    %1182 = vmatprep.subr.mxu0 %v1120
    %1183 = vmatpush1.msra.mxu0 %v1119
    %1184 = vmatprep.subr.mxu0 %v1117
    %1185 = vmatpush1.msra.mxu0 %v1116
    %1186 = vmatprep.subr.mxu0 %v1114
    %1187 = vmatpush1.msra.mxu0 %v1113
    %1188 = vmatprep.subr.mxu0 %v1111
    %1189 = vmatpush1.msra.mxu0 %v1110
    %1190 = vmatprep.subr.mxu0 0.0
    %1191 = vmatpush2.msra.mxu0 0.0
    %1192 = vmatprep.subr.mxu0 0.0
    %1193 = vmatpush2.msra.mxu0 0.0
    %1194 = vmatprep.subr.mxu0 0.0
    %1195 = vmatpush2.msra.mxu0 0.0
    %1196 = vmatprep.subr.mxu0 0.0
    %1197 = vmatpush2.msra.mxu0 0.0
    %1198 = vmatprep.subr.mxu0 0.0
    %1199 = vmatpush2.msra.mxu0 0.0
    %1200 = vmatprep.subr.mxu0 0.0
    %1201 = vmatpush2.msra.mxu0 0.0
    %1202 = vmatprep.subr.mxu0 0.0
    %1203 = vmatpush2.msra.mxu0 0.0
    %1204 = vmatprep.subr.mxu0 0.0
    %1205 = vmatpush2.msra.mxu0 0.0
    %1206 = vmatprep.subr.mxu0 0.0
    %1207 = vmatpush2.msra.mxu0 0.0
    %1208 = vmatprep.subr.mxu0 0.0
    %1209 = vmatpush2.msra.mxu0 0.0
    %1210 = vmatprep.subr.mxu0 0.0
    %1211 = vmatpush2.msra.mxu0 0.0
    %1212 = vmatprep.subr.mxu0 0.0
    %1213 = vmatpush2.msra.mxu0 0.0
    %1214 = vmatprep.subr.mxu0 0.0
    %1215 = vmatpush2.msra.mxu0 0.0
    %1216 = vmatprep.subr.mxu0 0.0
    %1217 = vmatpush2.msra.mxu0 0.0
    %1218 = vmatprep.subr.mxu0 0.0
    %1219 = vmatpush2.msra.mxu0 0.0
    %1220 = vmatprep.subr.mxu0 0.0
    %1221 = vmatpush2.msra.mxu0 0.0
    %1222 = vmatprep.mubr.f32.mxu0 0.0
    %1223 = vmatmul.mubr.f32.gmra.mxu0 %v1094
    %v1224 = vpop.f32.mrf.mxu0
    %v1225 = vadd.f32 0.0, %v1224
    %v1226 = vpop.f32.mrf.mxu0
    %v1227 = vadd.f32 0.0, %v1226
    %1228 = vmatprep.mubr.f32.mxu0 0.0
    %1229 = vmatmul.mubr.f32.gmra.mxu0 %v1095
    %v1230 = vpop.f32.mrf.mxu0
    %v1231 = vadd.f32 0.0, %v1230
    %v1232 = vpop.f32.mrf.mxu0
    %v1233 = vadd.f32 0.0, %v1232
    %1234 = vmatprep.mubr.f32.mxu0 0.0
    %1235 = vmatmul.mubr.f32.gmra.mxu0 %v1096
    %v1236 = vpop.f32.mrf.mxu0
    %v1237 = vadd.f32 0.0, %v1236
    %v1238 = vpop.f32.mrf.mxu0
    %v1239 = vadd.f32 0.0, %v1238
    %1240 = vmatprep.mubr.f32.mxu0 0.0
    %1241 = vmatmul.mubr.f32.gmra.mxu0 %v1097
    %v1242 = vpop.f32.mrf.mxu0
    %v1243 = vadd.f32 0.0, %v1242
    %v1244 = vpop.f32.mrf.mxu0
    %v1245 = vadd.f32 0.0, %v1244
    %1246 = vmatprep.mubr.f32.mxu0 0.0
    %1247 = vmatmul.mubr.f32.gmra.mxu0 %v1098
    %v1248 = vpop.f32.mrf.mxu0
    %v1249 = vadd.f32 0.0, %v1248
    %v1250 = vpop.f32.mrf.mxu0
    %v1251 = vadd.f32 0.0, %v1250
    %1252 = vmatprep.mubr.f32.mxu0 0.0
    %1253 = vmatmul.mubr.f32.gmra.mxu0 %v1099
    %v1254 = vpop.f32.mrf.mxu0
    %v1255 = vadd.f32 0.0, %v1254
    %v1256 = vpop.f32.mrf.mxu0
    %v1257 = vadd.f32 0.0, %v1256
    %1258 = vmatprep.mubr.f32.mxu0 0.0
    %1259 = vmatmul.mubr.f32.gmra.mxu0 %v1100
    %v1260 = vpop.f32.mrf.mxu0
    %v1261 = vadd.f32 0.0, %v1260
    %v1262 = vpop.f32.mrf.mxu0
    %v1263 = vadd.f32 0.0, %v1262
    %1264 = vmatprep.mubr.f32.mxu0 0.0
    %1265 = vmatmul.mubr.f32.gmra.mxu0 %v1101
    %v1266 = vpop.f32.mrf.mxu0
    %v1267 = vadd.f32 0.0, %v1266
    %v1268 = vpop.f32.mrf.mxu0
    %v1269 = vadd.f32 0.0, %v1268
    %1270 = vmatprep.mubr.f32.mxu0 0.0
    %1271 = vmatmul.mubr.f32.gmra.mxu0 %v1102
    %v1272 = vpop.f32.mrf.mxu0
    %v1273 = vadd.f32 0.0, %v1272
    %v1274 = vpop.f32.mrf.mxu0
    %v1275 = vadd.f32 0.0, %v1274
    %1276 = vmatprep.mubr.f32.mxu0 0.0
    %1277 = vmatmul.mubr.f32.gmra.mxu0 %v1103
    %v1278 = vpop.f32.mrf.mxu0
    %v1279 = vadd.f32 0.0, %v1278
    %v1280 = vpop.f32.mrf.mxu0
    %v1281 = vadd.f32 0.0, %v1280
    %1282 = vmatprep.mubr.f32.mxu0 0.0
    %1283 = vmatmul.mubr.f32.gmra.mxu0 %v1104
    %v1284 = vpop.f32.mrf.mxu0
    %v1285 = vadd.f32 0.0, %v1284
    %v1286 = vpop.f32.mrf.mxu0
    %v1287 = vadd.f32 0.0, %v1286
    %1288 = vmatprep.mubr.f32.mxu0 0.0
    %1289 = vmatmul.mubr.f32.gmra.mxu0 %v1105
    %v1290 = vpop.f32.mrf.mxu0
    %v1291 = vadd.f32 0.0, %v1290
    %v1292 = vpop.f32.mrf.mxu0
    %v1293 = vadd.f32 0.0, %v1292
    %1294 = vmatprep.mubr.f32.mxu0 0.0
    %1295 = vmatmul.mubr.f32.gmra.mxu0 %v1106
    %v1296 = vpop.f32.mrf.mxu0
    %v1297 = vadd.f32 0.0, %v1296
    %v1298 = vpop.f32.mrf.mxu0
    %v1299 = vadd.f32 0.0, %v1298
    %1300 = vmatprep.mubr.f32.mxu0 0.0
    %1301 = vmatmul.mubr.f32.gmra.mxu0 %v1107
    %v1302 = vpop.f32.mrf.mxu0
    %v1303 = vadd.f32 0.0, %v1302
    %v1304 = vpop.f32.mrf.mxu0
    %v1305 = vadd.f32 0.0, %v1304
    %1306 = vmatprep.mubr.f32.mxu0 0.0
    %1307 = vmatmul.mubr.f32.gmra.mxu0 %v1108
    %v1308 = vpop.f32.mrf.mxu0
    %v1309 = vadd.f32 0.0, %v1308
    %v1310 = vpop.f32.mrf.mxu0
    %v1311 = vadd.f32 0.0, %v1310
    %1312 = vmatprep.mubr.f32.mxu0 0.0
    %1313 = vmatmul.mubr.f32.gmra.mxu0 %v1109
    %v1314 = vpop.f32.mrf.mxu0
    %v1315 = vadd.f32 0.0, %v1314
    %v1316 = vpop.f32.mrf.mxu0
    %v1317 = vadd.f32 0.0, %v1316
    %1318 = vdwg.mxu0
    %1319 = vmatprep.subr.mxu0 0.0
    %1320 = vmatpush1.msra.mxu0 %v1157
    %1321 = vmatprep.subr.mxu0 0.0
    %1322 = vmatpush1.msra.mxu0 %v1154
    %1323 = vmatprep.subr.mxu0 0.0
    %1324 = vmatpush1.msra.mxu0 %v1151
    %1325 = vmatprep.subr.mxu0 0.0
    %1326 = vmatpush1.msra.mxu0 %v1148
    %1327 = vmatprep.subr.mxu0 0.0
    %1328 = vmatpush1.msra.mxu0 %v1145
    %1329 = vmatprep.subr.mxu0 0.0
    %1330 = vmatpush1.msra.mxu0 %v1142
    %1331 = vmatprep.subr.mxu0 0.0
    %1332 = vmatpush1.msra.mxu0 %v1139
    %1333 = vmatprep.subr.mxu0 0.0
    %1334 = vmatpush1.msra.mxu0 %v1136
    %1335 = vmatprep.subr.mxu0 0.0
    %1336 = vmatpush1.msra.mxu0 %v1133
    %1337 = vmatprep.subr.mxu0 0.0
    %1338 = vmatpush1.msra.mxu0 %v1130
    %1339 = vmatprep.subr.mxu0 0.0
    %1340 = vmatpush1.msra.mxu0 %v1127
    %1341 = vmatprep.subr.mxu0 0.0
    %1342 = vmatpush1.msra.mxu0 %v1124
    %1343 = vmatprep.subr.mxu0 0.0
    %1344 = vmatpush1.msra.mxu0 %v1121
    %1345 = vmatprep.subr.mxu0 0.0
    %1346 = vmatpush1.msra.mxu0 %v1118
    %1347 = vmatprep.subr.mxu0 0.0
    %1348 = vmatpush1.msra.mxu0 %v1115
    %1349 = vmatprep.subr.mxu0 0.0
    %1350 = vmatpush1.msra.mxu0 %v1112
    %1351 = vmatprep.subr.mxu0 0.0
    %1352 = vmatpush2.msra.mxu0 0.0
    %1353 = vmatprep.subr.mxu0 0.0
    %1354 = vmatpush2.msra.mxu0 0.0
    %1355 = vmatprep.subr.mxu0 0.0
    %1356 = vmatpush2.msra.mxu0 0.0
    %1357 = vmatprep.subr.mxu0 0.0
    %1358 = vmatpush2.msra.mxu0 0.0
    %1359 = vmatprep.subr.mxu0 0.0
    %1360 = vmatpush2.msra.mxu0 0.0
    %1361 = vmatprep.subr.mxu0 0.0
    %1362 = vmatpush2.msra.mxu0 0.0
    %1363 = vmatprep.subr.mxu0 0.0
    %1364 = vmatpush2.msra.mxu0 0.0
    %1365 = vmatprep.subr.mxu0 0.0
    %1366 = vmatpush2.msra.mxu0 0.0
    %1367 = vmatprep.subr.mxu0 0.0
    %1368 = vmatpush2.msra.mxu0 0.0
    %1369 = vmatprep.subr.mxu0 0.0
    %1370 = vmatpush2.msra.mxu0 0.0
    %1371 = vmatprep.subr.mxu0 0.0
    %1372 = vmatpush2.msra.mxu0 0.0
    %1373 = vmatprep.subr.mxu0 0.0
    %1374 = vmatpush2.msra.mxu0 0.0
    %1375 = vmatprep.subr.mxu0 0.0
    %1376 = vmatpush2.msra.mxu0 0.0
    %1377 = vmatprep.subr.mxu0 0.0
    %1378 = vmatpush2.msra.mxu0 0.0
    %1379 = vmatprep.subr.mxu0 0.0
    %1380 = vmatpush2.msra.mxu0 0.0
    %1381 = vmatprep.subr.mxu0 0.0
    %1382 = vmatpush2.msra.mxu0 0.0
    %1383 = vmatprep.mubr.f32.mxu0 0.0
    %1384 = vmatmul.mubr.f32.gmra.mxu0 %v1094
    %v1385 = vpop.f32.mrf.mxu0
    %v1386 = vadd.f32 0.0, %v1385
    %v1387 = vpop.f32.mrf.mxu0
    %1388 = vmatprep.mubr.f32.mxu0 0.0
    %1389 = vmatmul.mubr.f32.gmra.mxu0 %v1095
    %v1390 = vpop.f32.mrf.mxu0
    %v1391 = vadd.f32 0.0, %v1390
    %v1392 = vpop.f32.mrf.mxu0
    %1393 = vmatprep.mubr.f32.mxu0 0.0
    %1394 = vmatmul.mubr.f32.gmra.mxu0 %v1096
    %v1395 = vpop.f32.mrf.mxu0
    %v1396 = vadd.f32 0.0, %v1395
    %v1397 = vpop.f32.mrf.mxu0
    %1398 = vmatprep.mubr.f32.mxu0 0.0
    %1399 = vmatmul.mubr.f32.gmra.mxu0 %v1097
    %v1400 = vpop.f32.mrf.mxu0
    %v1401 = vadd.f32 0.0, %v1400
    %v1402 = vpop.f32.mrf.mxu0
    %1403 = vmatprep.mubr.f32.mxu0 0.0
    %1404 = vmatmul.mubr.f32.gmra.mxu0 %v1098
    %v1405 = vpop.f32.mrf.mxu0
    %v1406 = vadd.f32 0.0, %v1405
    %v1407 = vpop.f32.mrf.mxu0
    %1408 = vmatprep.mubr.f32.mxu0 0.0
    %1409 = vmatmul.mubr.f32.gmra.mxu0 %v1099
    %v1410 = vpop.f32.mrf.mxu0
    %v1411 = vadd.f32 0.0, %v1410
    %v1412 = vpop.f32.mrf.mxu0
    %1413 = vmatprep.mubr.f32.mxu0 0.0
    %1414 = vmatmul.mubr.f32.gmra.mxu0 %v1100
    %v1415 = vpop.f32.mrf.mxu0
    %v1416 = vadd.f32 0.0, %v1415
    %v1417 = vpop.f32.mrf.mxu0
    %1418 = vmatprep.mubr.f32.mxu0 0.0
    %1419 = vmatmul.mubr.f32.gmra.mxu0 %v1101
    %v1420 = vpop.f32.mrf.mxu0
    %v1421 = vadd.f32 0.0, %v1420
    %v1422 = vpop.f32.mrf.mxu0
    %1423 = vmatprep.mubr.f32.mxu0 0.0
    %1424 = vmatmul.mubr.f32.gmra.mxu0 %v1102
    %v1425 = vpop.f32.mrf.mxu0
    %v1426 = vadd.f32 0.0, %v1425
    %v1427 = vpop.f32.mrf.mxu0
    %1428 = vmatprep.mubr.f32.mxu0 0.0
    %1429 = vmatmul.mubr.f32.gmra.mxu0 %v1103
    %v1430 = vpop.f32.mrf.mxu0
    %v1431 = vadd.f32 0.0, %v1430
    %v1432 = vpop.f32.mrf.mxu0
    %1433 = vmatprep.mubr.f32.mxu0 0.0
    %1434 = vmatmul.mubr.f32.gmra.mxu0 %v1104
    %v1435 = vpop.f32.mrf.mxu0
    %v1436 = vadd.f32 0.0, %v1435
    %v1437 = vpop.f32.mrf.mxu0
    %1438 = vmatprep.mubr.f32.mxu0 0.0
    %1439 = vmatmul.mubr.f32.gmra.mxu0 %v1105
    %v1440 = vpop.f32.mrf.mxu0
    %v1441 = vadd.f32 0.0, %v1440
    %v1442 = vpop.f32.mrf.mxu0
    %1443 = vmatprep.mubr.f32.mxu0 0.0
    %1444 = vmatmul.mubr.f32.gmra.mxu0 %v1106
    %v1445 = vpop.f32.mrf.mxu0
    %v1446 = vadd.f32 0.0, %v1445
    %v1447 = vpop.f32.mrf.mxu0
    %1448 = vmatprep.mubr.f32.mxu0 0.0
    %1449 = vmatmul.mubr.f32.gmra.mxu0 %v1107
    %v1450 = vpop.f32.mrf.mxu0
    %v1451 = vadd.f32 0.0, %v1450
    %v1452 = vpop.f32.mrf.mxu0
    %1453 = vmatprep.mubr.f32.mxu0 0.0
    %1454 = vmatmul.mubr.f32.gmra.mxu0 %v1108
    %v1455 = vpop.f32.mrf.mxu0
    %v1456 = vadd.f32 0.0, %v1455
    %v1457 = vpop.f32.mrf.mxu0
    %1458 = vmatprep.mubr.f32.mxu0 0.0
    %1459 = vmatmul.mubr.f32.gmra.mxu0 %v1109
    %v1460 = vpop.f32.mrf.mxu0
    %v1461 = vadd.f32 0.0, %v1460
    %v1462 = vpop.f32.mrf.mxu0
    %1463 = vdwg.mxu0
    %v1464 = vld [vmem:[#allocation13 + $0x10] sm:$0xff]
    %v1465 = vld [vmem:[#allocation13 + $0x30] sm:$0xff]
    %v1466 = vld [vmem:[#allocation13 + $0x50] sm:$0xff]
    %v1467 = vld [vmem:[#allocation13 + $0x70] sm:$0xff]
    %v1468 = vld [vmem:[#allocation13 + $0x90] sm:$0xff]
    %v1469 = vld [vmem:[#allocation13 + $0xb0] sm:$0xff]
    %v1470 = vld [vmem:[#allocation13 + $0xd0] sm:$0xff]
    %v1471 = vld [vmem:[#allocation13 + $0xf0] sm:$0xff]
    %v1472 = vld [vmem:[#allocation13 + $0x110] sm:$0xff]
    %v1473 = vld [vmem:[#allocation13 + $0x130] sm:$0xff]
    %v1474 = vld [vmem:[#allocation13 + $0x150] sm:$0xff]
    %v1475 = vld [vmem:[#allocation13 + $0x170] sm:$0xff]
    %v1476 = vld [vmem:[#allocation13 + $0x190] sm:$0xff]
    %v1477 = vld [vmem:[#allocation13 + $0x1b0] sm:$0xff]
    %v1478 = vld [vmem:[#allocation13 + $0x1d0] sm:$0xff]
    %v1479 = vld [vmem:[#allocation13 + $0x1f0] sm:$0xff]
    %v1480 = vmul.f32 %v1315, %v1464
    %v1481 = vmul.f32 %v1225, %v1465
    %v1482 = vmul.f32 %v1231, %v1466
    %v1483 = vmul.f32 %v1237, %v1467
    %v1484 = vmul.f32 %v1243, %v1468
    %v1485 = vmul.f32 %v1249, %v1469
    %v1486 = vmul.f32 %v1255, %v1470
    %v1487 = vmul.f32 %v1261, %v1471
    %v1488 = vmul.f32 %v1267, %v1472
    %v1489 = vmul.f32 %v1273, %v1473
    %v1490 = vmul.f32 %v1279, %v1474
    %v1491 = vmul.f32 %v1285, %v1475
    %v1492 = vmul.f32 %v1291, %v1476
    %v1493 = vmul.f32 %v1297, %v1477
    %v1494 = vmul.f32 %v1303, %v1478
    %v1495 = vmul.f32 %v1309, %v1479
    %v1496 = vld [vmem:[#allocation13 + $0x18] sm:$0xff]
    %v1497 = vld [vmem:[#allocation13 + $0x38] sm:$0xff]
    %v1498 = vld [vmem:[#allocation13 + $0x58] sm:$0xff]
    %v1499 = vld [vmem:[#allocation13 + $0x78] sm:$0xff]
    %v1500 = vld [vmem:[#allocation13 + $0x98] sm:$0xff]
    %v1501 = vld [vmem:[#allocation13 + $0xb8] sm:$0xff]
    %v1502 = vld [vmem:[#allocation13 + $0xd8] sm:$0xff]
    %v1503 = vld [vmem:[#allocation13 + $0xf8] sm:$0xff]
    %v1504 = vld [vmem:[#allocation13 + $0x118] sm:$0xff]
    %v1505 = vld [vmem:[#allocation13 + $0x138] sm:$0xff]
    %v1506 = vld [vmem:[#allocation13 + $0x158] sm:$0xff]
    %v1507 = vld [vmem:[#allocation13 + $0x178] sm:$0xff]
    %v1508 = vld [vmem:[#allocation13 + $0x198] sm:$0xff]
    %v1509 = vld [vmem:[#allocation13 + $0x1b8] sm:$0xff]
    %v1510 = vld [vmem:[#allocation13 + $0x1d8] sm:$0xff]
    %v1511 = vld [vmem:[#allocation13 + $0x1f8] sm:$0xff]
    %v1512 = vmul.f32 %v1391, %v1496
    %v1513 = vmul.f32 %v1396, %v1497
    %v1514 = vmul.f32 %v1401, %v1498
    %v1515 = vmul.f32 %v1406, %v1499
    %v1516 = vmul.f32 %v1411, %v1500
    %v1517 = vmul.f32 %v1416, %v1501
    %v1518 = vmul.f32 %v1421, %v1502
    %v1519 = vmul.f32 %v1426, %v1503
    %v1520 = vmul.f32 %v1431, %v1504
    %v1521 = vmul.f32 %v1436, %v1505
    %v1522 = vmul.f32 %v1441, %v1506
    %v1523 = vmul.f32 %v1446, %v1507
    %v1524 = vmul.f32 %v1451, %v1508
    %v1525 = vmul.f32 %v1456, %v1509
    %v1526 = vmul.f32 %v1461, %v1510
    %v1527 = vmul.f32 %v1386, %v1511
    %v1528 = vadd.f32 %v1480, %v1227
    %v1529 = vadd.f32 %v1481, %v1233
    %v1530 = vadd.f32 %v1482, %v1239
    %v1531 = vadd.f32 %v1483, %v1245
    %v1532 = vadd.f32 %v1484, %v1251
    %v1533 = vadd.f32 %v1485, %v1257
    %v1534 = vadd.f32 %v1486, %v1263
    %v1535 = vadd.f32 %v1487, %v1269
    %v1536 = vadd.f32 %v1488, %v1275
    %v1537 = vadd.f32 %v1489, %v1281
    %v1538 = vadd.f32 %v1490, %v1287
    %v1539 = vadd.f32 %v1491, %v1293
    %v1540 = vadd.f32 %v1492, %v1299
    %v1541 = vadd.f32 %v1493, %v1305
    %v1542 = vadd.f32 %v1494, %v1311
    %v1543 = vadd.f32 %v1495, %v1317
    %v1544 = vadd.f32 %v1528, %v1512
    %v1545 = vadd.f32 %v1529, %v1513
    %v1546 = vadd.f32 %v1530, %v1514
    %v1547 = vadd.f32 %v1531, %v1515
    %v1548 = vadd.f32 %v1532, %v1516
    %v1549 = vadd.f32 %v1533, %v1517
    %v1550 = vadd.f32 %v1534, %v1518
    %v1551 = vadd.f32 %v1535, %v1519
    %v1552 = vadd.f32 %v1536, %v1520
    %v1553 = vadd.f32 %v1537, %v1521
    %v1554 = vadd.f32 %v1538, %v1522
    %v1555 = vadd.f32 %v1539, %v1523
    %v1556 = vadd.f32 %v1540, %v1524
    %v1557 = vadd.f32 %v1541, %v1525
    %v1558 = vadd.f32 %v1542, %v1526
    %v1559 = vadd.f32 %v1543, %v1527
    %v1560 = vld [vmem:[%s8] sm:$0x1]
    %v1562 = vlaneseq
    %v1563 = vshrl.u32 %v1562, 7
    %v1564 = vsub.s32 0, %v1563
    %v1565 = vrot.slane %v1560, %v1564
    %v1567 = vadd.f32 %v1544, %v1565
    %v1568 = vadd.f32 %v1545, %v1565
    %v1569 = vadd.f32 %v1546, %v1565
    %v1570 = vadd.f32 %v1547, %v1565
    %v1571 = vadd.f32 %v1548, %v1565
    %v1572 = vadd.f32 %v1549, %v1565
    %v1573 = vadd.f32 %v1550, %v1565
    %v1574 = vadd.f32 %v1551, %v1565
    %v1575 = vadd.f32 %v1552, %v1565
    %v1576 = vadd.f32 %v1553, %v1565
    %v1577 = vadd.f32 %v1554, %v1565
    %v1578 = vadd.f32 %v1555, %v1565
    %v1579 = vadd.f32 %v1556, %v1565
    %v1580 = vadd.f32 %v1557, %v1565
    %v1581 = vadd.f32 %v1558, %v1565
    %v1582 = vadd.f32 %v1559, %v1565
    %v1583 = vadd.f32 %v1567, %v1078
    %v1584 = vadd.f32 %v1568, %v1079
    %v1585 = vadd.f32 %v1569, %v1080
    %v1586 = vadd.f32 %v1570, %v1081
    %v1587 = vadd.f32 %v1571, %v1082
    %v1588 = vadd.f32 %v1572, %v1083
    %v1589 = vadd.f32 %v1573, %v1084
    %v1590 = vadd.f32 %v1574, %v1085
    %v1591 = vadd.f32 %v1575, %v1086
    %v1592 = vadd.f32 %v1576, %v1087
    %v1593 = vadd.f32 %v1577, %v1088
    %v1594 = vadd.f32 %v1578, %v1089
    %v1595 = vadd.f32 %v1579, %v1090
    %v1596 = vadd.f32 %v1580, %v1091
    %v1597 = vadd.f32 %v1581, %v1092
    %v1598 = vadd.f32 %v1582, %v1093
    %v1599 = vmax.f32 %v1583, 0.0
    %v1600 = vmax.f32 %v1584, 0.0
    %v1601 = vmax.f32 %v1585, 0.0
    %v1602 = vmax.f32 %v1586, 0.0
    %v1603 = vmax.f32 %v1587, 0.0
    %v1604 = vmax.f32 %v1588, 0.0
    %v1605 = vmax.f32 %v1589, 0.0
    %v1606 = vmax.f32 %v1590, 0.0
    %v1607 = vmax.f32 %v1591, 0.0
    %v1608 = vmax.f32 %v1592, 0.0
    %v1609 = vmax.f32 %v1593, 0.0
    %v1610 = vmax.f32 %v1594, 0.0
    %v1611 = vmax.f32 %v1595, 0.0
    %v1612 = vmax.f32 %v1596, 0.0
    %v1613 = vmax.f32 %v1597, 0.0
    %v1614 = vmax.f32 %v1598, 0.0
    %v1615 = vld [vmem:[#allocation11] sm:$0xff]
    %v1616 = vld [vmem:[#allocation11 + $0x8] sm:$0xff]
    %v1617 = vld [vmem:[#allocation11 + $0x10] sm:$0xff]
    %v1618 = vld [vmem:[#allocation11 + $0x18] sm:$0xff]
    %v1619 = vld [vmem:[#allocation11 + $0x20] sm:$0xff]
    %v1620 = vld [vmem:[#allocation11 + $0x28] sm:$0xff]
    %v1621 = vld [vmem:[#allocation11 + $0x30] sm:$0xff]
    %v1622 = vld [vmem:[#allocation11 + $0x38] sm:$0xff]
    %v1623 = vld [vmem:[#allocation11 + $0x40] sm:$0xff]
    %v1624 = vld [vmem:[#allocation11 + $0x48] sm:$0xff]
    %v1625 = vld [vmem:[#allocation11 + $0x50] sm:$0xff]
    %v1626 = vld [vmem:[#allocation11 + $0x58] sm:$0xff]
    %v1627 = vld [vmem:[#allocation11 + $0x60] sm:$0xff]
    %v1628 = vld [vmem:[#allocation11 + $0x68] sm:$0xff]
    %v1629 = vld [vmem:[#allocation11 + $0x70] sm:$0xff]
    %v1630 = vld [vmem:[#allocation11 + $0x78] sm:$0xff]
    %v1631 = vld [vmem:[%s10] sm:$0x1]
    %v1633 = vlaneseq
    %v1634 = vshrl.u32 %v1633, 7
    %v1635 = vsub.s32 0, %v1634
    %v1636 = vrot.slane %v1631, %v1635
    %1638 = vmatprep.subr.mxu0 0.0
    %1639 = vmatpush1.msra.mxu0 %v1630
    %1640 = vmatprep.subr.mxu0 0.0
    %1641 = vmatpush1.msra.mxu0 %v1629
    %1642 = vmatprep.subr.mxu0 0.0
    %1643 = vmatpush1.msra.mxu0 %v1628
    %1644 = vmatprep.subr.mxu0 0.0
    %1645 = vmatpush1.msra.mxu0 %v1627
    %1646 = vmatprep.subr.mxu0 0.0
    %1647 = vmatpush1.msra.mxu0 %v1626
    %1648 = vmatprep.subr.mxu0 0.0
    %1649 = vmatpush1.msra.mxu0 %v1625
    %1650 = vmatprep.subr.mxu0 0.0
    %1651 = vmatpush1.msra.mxu0 %v1624
    %1652 = vmatprep.subr.mxu0 0.0
    %1653 = vmatpush1.msra.mxu0 %v1623
    %1654 = vmatprep.subr.mxu0 0.0
    %1655 = vmatpush1.msra.mxu0 %v1622
    %1656 = vmatprep.subr.mxu0 0.0
    %1657 = vmatpush1.msra.mxu0 %v1621
    %1658 = vmatprep.subr.mxu0 0.0
    %1659 = vmatpush1.msra.mxu0 %v1620
    %1660 = vmatprep.subr.mxu0 0.0
    %1661 = vmatpush1.msra.mxu0 %v1619
    %1662 = vmatprep.subr.mxu0 0.0
    %1663 = vmatpush1.msra.mxu0 %v1618
    %1664 = vmatprep.subr.mxu0 0.0
    %1665 = vmatpush1.msra.mxu0 %v1617
    %1666 = vmatprep.subr.mxu0 0.0
    %1667 = vmatpush1.msra.mxu0 %v1616
    %1668 = vmatprep.subr.mxu0 0.0
    %1669 = vmatpush1.msra.mxu0 %v1615
    %1670 = vmatprep.subr.mxu0 0.0
    %1671 = vmatpush2.msra.mxu0 0.0
    %1672 = vmatprep.subr.mxu0 0.0
    %1673 = vmatpush2.msra.mxu0 0.0
    %1674 = vmatprep.subr.mxu0 0.0
    %1675 = vmatpush2.msra.mxu0 0.0
    %1676 = vmatprep.subr.mxu0 0.0
    %1677 = vmatpush2.msra.mxu0 0.0
    %1678 = vmatprep.subr.mxu0 0.0
    %1679 = vmatpush2.msra.mxu0 0.0
    %1680 = vmatprep.subr.mxu0 0.0
    %1681 = vmatpush2.msra.mxu0 0.0
    %1682 = vmatprep.subr.mxu0 0.0
    %1683 = vmatpush2.msra.mxu0 0.0
    %1684 = vmatprep.subr.mxu0 0.0
    %1685 = vmatpush2.msra.mxu0 0.0
    %1686 = vmatprep.subr.mxu0 0.0
    %1687 = vmatpush2.msra.mxu0 0.0
    %1688 = vmatprep.subr.mxu0 0.0
    %1689 = vmatpush2.msra.mxu0 0.0
    %1690 = vmatprep.subr.mxu0 0.0
    %1691 = vmatpush2.msra.mxu0 0.0
    %1692 = vmatprep.subr.mxu0 0.0
    %1693 = vmatpush2.msra.mxu0 0.0
    %1694 = vmatprep.subr.mxu0 0.0
    %1695 = vmatpush2.msra.mxu0 0.0
    %1696 = vmatprep.subr.mxu0 0.0
    %1697 = vmatpush2.msra.mxu0 0.0
    %1698 = vmatprep.subr.mxu0 0.0
    %1699 = vmatpush2.msra.mxu0 0.0
    %1700 = vmatprep.subr.mxu0 0.0
    %1701 = vmatpush2.msra.mxu0 0.0
    %1702 = vmatprep.mubr.f32.mxu0 0.0
    %1703 = vmatmul.mubr.f32.gmra.mxu0 %v1599
    %v1704 = vpop.f32.mrf.mxu0
    %v1705 = vadd.f32 %v1636, %v1704
    %v1706 = vpop.f32.mrf.mxu0
    %1707 = vmatprep.mubr.f32.mxu0 0.0
    %1708 = vmatmul.mubr.f32.gmra.mxu0 %v1600
    %v1709 = vpop.f32.mrf.mxu0
    %v1710 = vadd.f32 %v1636, %v1709
    %v1711 = vpop.f32.mrf.mxu0
    %1712 = vmatprep.mubr.f32.mxu0 0.0
    %1713 = vmatmul.mubr.f32.gmra.mxu0 %v1601
    %v1714 = vpop.f32.mrf.mxu0
    %v1715 = vadd.f32 %v1636, %v1714
    %v1716 = vpop.f32.mrf.mxu0
    %1717 = vmatprep.mubr.f32.mxu0 0.0
    %1718 = vmatmul.mubr.f32.gmra.mxu0 %v1602
    %v1719 = vpop.f32.mrf.mxu0
    %v1720 = vadd.f32 %v1636, %v1719
    %v1721 = vpop.f32.mrf.mxu0
    %1722 = vmatprep.mubr.f32.mxu0 0.0
    %1723 = vmatmul.mubr.f32.gmra.mxu0 %v1603
    %v1724 = vpop.f32.mrf.mxu0
    %v1725 = vadd.f32 %v1636, %v1724
    %v1726 = vpop.f32.mrf.mxu0
    %1727 = vmatprep.mubr.f32.mxu0 0.0
    %1728 = vmatmul.mubr.f32.gmra.mxu0 %v1604
    %v1729 = vpop.f32.mrf.mxu0
    %v1730 = vadd.f32 %v1636, %v1729
    %v1731 = vpop.f32.mrf.mxu0
    %1732 = vmatprep.mubr.f32.mxu0 0.0
    %1733 = vmatmul.mubr.f32.gmra.mxu0 %v1605
    %v1734 = vpop.f32.mrf.mxu0
    %v1735 = vadd.f32 %v1636, %v1734
    %v1736 = vpop.f32.mrf.mxu0
    %1737 = vmatprep.mubr.f32.mxu0 0.0
    %1738 = vmatmul.mubr.f32.gmra.mxu0 %v1606
    %v1739 = vpop.f32.mrf.mxu0
    %v1740 = vadd.f32 %v1636, %v1739
    %v1741 = vpop.f32.mrf.mxu0
    %1742 = vmatprep.mubr.f32.mxu0 0.0
    %1743 = vmatmul.mubr.f32.gmra.mxu0 %v1607
    %v1744 = vpop.f32.mrf.mxu0
    %v1745 = vadd.f32 %v1636, %v1744
    %v1746 = vpop.f32.mrf.mxu0
    %1747 = vmatprep.mubr.f32.mxu0 0.0
    %1748 = vmatmul.mubr.f32.gmra.mxu0 %v1608
    %v1749 = vpop.f32.mrf.mxu0
    %v1750 = vadd.f32 %v1636, %v1749
    %v1751 = vpop.f32.mrf.mxu0
    %1752 = vmatprep.mubr.f32.mxu0 0.0
    %1753 = vmatmul.mubr.f32.gmra.mxu0 %v1609
    %v1754 = vpop.f32.mrf.mxu0
    %v1755 = vadd.f32 %v1636, %v1754
    %v1756 = vpop.f32.mrf.mxu0
    %1757 = vmatprep.mubr.f32.mxu0 0.0
    %1758 = vmatmul.mubr.f32.gmra.mxu0 %v1610
    %v1759 = vpop.f32.mrf.mxu0
    %v1760 = vadd.f32 %v1636, %v1759
    %v1761 = vpop.f32.mrf.mxu0
    %1762 = vmatprep.mubr.f32.mxu0 0.0
    %1763 = vmatmul.mubr.f32.gmra.mxu0 %v1611
    %v1764 = vpop.f32.mrf.mxu0
    %v1765 = vadd.f32 %v1636, %v1764
    %v1766 = vpop.f32.mrf.mxu0
    %1767 = vmatprep.mubr.f32.mxu0 0.0
    %1768 = vmatmul.mubr.f32.gmra.mxu0 %v1612
    %v1769 = vpop.f32.mrf.mxu0
    %v1770 = vadd.f32 %v1636, %v1769
    %v1771 = vpop.f32.mrf.mxu0
    %1772 = vmatprep.mubr.f32.mxu0 0.0
    %1773 = vmatmul.mubr.f32.gmra.mxu0 %v1613
    %v1774 = vpop.f32.mrf.mxu0
    %v1775 = vadd.f32 %v1636, %v1774
    %v1776 = vpop.f32.mrf.mxu0
    %1777 = vmatprep.mubr.f32.mxu0 0.0
    %1778 = vmatmul.mubr.f32.gmra.mxu0 %v1614
    %v1779 = vpop.f32.mrf.mxu0
    %v1780 = vadd.f32 %v1636, %v1779
    %v1781 = vpop.f32.mrf.mxu0
    %1782 = vdwg.mxu0
    %v1783 = vadd.f32 %v1705, %v137
    %v1784 = vadd.f32 %v1710, %v138
    %v1785 = vadd.f32 %v1715, %v139
    %v1786 = vadd.f32 %v1720, %v140
    %v1787 = vadd.f32 %v1725, %v141
    %v1788 = vadd.f32 %v1730, %v142
    %v1789 = vadd.f32 %v1735, %v143
    %v1790 = vadd.f32 %v1740, %v144
    %v1791 = vadd.f32 %v1745, %v145
    %v1792 = vadd.f32 %v1750, %v146
    %v1793 = vadd.f32 %v1755, %v147
    %v1794 = vadd.f32 %v1760, %v148
    %v1795 = vadd.f32 %v1765, %v149
    %v1796 = vadd.f32 %v1770, %v150
    %v1797 = vadd.f32 %v1775, %v151
    %v1798 = vadd.f32 %v1780, %v152
    %v1799 = vmax.f32 %v1783, 0.0
    %v1800 = vmax.f32 %v1784, 0.0
    %v1801 = vmax.f32 %v1785, 0.0
    %v1802 = vmax.f32 %v1786, 0.0
    %v1803 = vmax.f32 %v1787, 0.0
    %v1804 = vmax.f32 %v1788, 0.0
    %v1805 = vmax.f32 %v1789, 0.0
    %v1806 = vmax.f32 %v1790, 0.0
    %v1807 = vmax.f32 %v1791, 0.0
    %v1808 = vmax.f32 %v1792, 0.0
    %v1809 = vmax.f32 %v1793, 0.0
    %v1810 = vmax.f32 %v1794, 0.0
    %v1811 = vmax.f32 %v1795, 0.0
    %v1812 = vmax.f32 %v1796, 0.0
    %v1813 = vmax.f32 %v1797, 0.0
    %v1814 = vmax.f32 %v1798, 0.0
    %1815 = vst [vmem:[#allocation14] sm:$0xff] %v1799
    %1816 = vst [vmem:[#allocation14 + $0x8] sm:$0xff] %v1800
    %1817 = vst [vmem:[#allocation14 + $0x10] sm:$0xff] %v1801
    %1818 = vst [vmem:[#allocation14 + $0x18] sm:$0xff] %v1802
    %1819 = vst [vmem:[#allocation14 + $0x20] sm:$0xff] %v1803
    %1820 = vst [vmem:[#allocation14 + $0x28] sm:$0xff] %v1804
    %1821 = vst [vmem:[#allocation14 + $0x30] sm:$0xff] %v1805
    %1822 = vst [vmem:[#allocation14 + $0x38] sm:$0xff] %v1806
    %1823 = vst [vmem:[#allocation14 + $0x40] sm:$0xff] %v1807
    %1824 = vst [vmem:[#allocation14 + $0x48] sm:$0xff] %v1808
    %1825 = vst [vmem:[#allocation14 + $0x50] sm:$0xff] %v1809
    %1826 = vst [vmem:[#allocation14 + $0x58] sm:$0xff] %v1810
    %1827 = vst [vmem:[#allocation14 + $0x60] sm:$0xff] %v1811
    %1828 = vst [vmem:[#allocation14 + $0x68] sm:$0xff] %v1812
    %1829 = vst [vmem:[#allocation14 + $0x70] sm:$0xff] %v1813
    %1830 = vst [vmem:[#allocation14 + $0x78] sm:$0xff] %v1814
    // Predicated region
    $region78: #{tpu_custom_call.1} parent=1 // pred_check
      _
    $region79: #{tpu_custom_call.1} parent=1 // pred_check_branch
      %1832 = sbr.rel (0) target = $region81
    $region80: #{tpu_custom_call.1} parent=1 // pred_region
      %s1834 = ssub.s32 2048, 2048
      %1835 = vsyncadd [#allocation4], %s1834
      %s1836 = sshll.u32 [#allocation14], 4
      %s1837 = int_to_ptr.vmem [resolvable:$true] %s1836
      %1842 = dma.vmem_to_hbm [thread:$0]  %s1837, 2048, %s12, [#allocation4], 128, 128, 8
    $region81: #{tpu_custom_call.1} parent=1 // pred_fallthru
      _
    // Predicated region
    $region82: #{tpu_custom_call.1} parent=1 // pred_check
      _
    $region83: #{tpu_custom_call.1} parent=1 // pred_check_branch
      %1844 = sbr.rel (0) target = $region85
    $region84: #{tpu_custom_call.1} parent=1 // pred_region
      %1845 = dma.done [#allocation4], 2048
    $region85: #{tpu_custom_call.1} parent=1 // pred_fallthru
      _
    %1846 = vsyncpa [#allocation3], 1
    %1847 = vsyncpa [#allocation6], 1
    %1848 = vsyncpa [#allocation9], 1
    %1849 = vsyncpa [#allocation12], 1
    %1850 = vsyncpa [#allocation4], 1

</llo_original>
